<compile_context>
chip_gen: v5e
topology: v5e:2x2
jax: 0.10.0
libtpu: 0.0.40
codegen_flags: <defaults>
</compile_context>

<pallas_src>
import functools

import jax
import jax.numpy as jnp
from jax import lax
from jax.experimental import pallas as pl
from jax.experimental.pallas import tpu as pltpu

EPS = 1e-5                       # torch.nn.BatchNorm1d default
TILE_TARGET_BYTES = 2 * 1024 * 1024   # ~2 MiB f32 per streamed (C, Lt) tile
VMEM_LIMIT_BYTES = 32 * 1024 * 1024   # fits scoped/physical VMEM on v5e/v6e/v7x


def _pick_l_tile(l, c, l_tile):
    """Lane-dim tile: ~TILE_TARGET_BYTES of f32, multiple of 128, <= padded L."""
    if l_tile is None:
        lt = max(128, (TILE_TARGET_BYTES // (4 * c)) // 128 * 128)
    else:
        lt = int(l_tile)                 # must be a multiple of 128
    lt = min(lt, pl.cdiv(l, 128) * 128)  # never pad beyond one 128-aligned tile
    return lt


# --------------------------- kernels ----------------------------------------


def _x_stats_kernel(x_ref, sum_ref, sumsq_ref):
    """Per-tile partial sum(x) / sum(x*x) over the lane (L) axis.

    Zero-padded lanes contribute 0 to both, so no masking is needed here.
    """
    x = x_ref[...].astype(jnp.float32)                      # (C, Lt)
    sum_ref[...] = jnp.sum(x, axis=1, keepdims=True)        # (C, 1) partial
    sumsq_ref[...] = jnp.sum(x * x, axis=1, keepdims=True)  # (C, 1) partial


def _norm_conv_stats_kernel(x_ref, w_ref, p_ref, h_ref, sum_ref, sumsq_ref,
                            *, mask_cols, l_true, l_tile):
    """h1 = W1 @ relu(scale1*x + shift1) + b1 (bf16 out) + partial h1 stats."""
    p = p_ref[...]                                           # (C, 8) packed params
    scale, shift, bias = p[:, 0:1], p[:, 1:2], p[:, 2:3]
    a = jnp.maximum(scale * x_ref[...] + shift, 0.0)         # (C, Lt)
    h = jnp.dot(w_ref[...], a, preferred_element_type=jnp.float32) + bias
    h_ref[...] = h.astype(h_ref.dtype)                       # bf16 store

    if mask_cols:
        # Exclude zero-padded tail columns from the h1 statistics: padded x is
        # zero, but relu(shift) is generally non-zero, so mask before summing.
        col = (pl.program_id(1) * l_tile
               + lax.broadcasted_iota(jnp.int32, h.shape, 1))
        h = jnp.where(col < l_true, h, 0.0)

    sum_ref[...] = jnp.sum(h, axis=1, keepdims=True)
    sumsq_ref[...] = jnp.sum(h * h, axis=1, keepdims=True)


def _norm_conv_residual_kernel(x_ref, h1_ref, w_ref, p_ref, out_ref):
    """out = W2 @ relu(scale2*h1 + shift2) + b2 + relu(scale_r*x + shift_r)."""
    p = p_ref[...]                                           # (C, 8) packed params
    scale2, shift2, bias2 = p[:, 0:1], p[:, 1:2], p[:, 2:3]
    scale_r, shift_r = p[:, 3:4], p[:, 4:5]
    h1 = h1_ref[...].astype(jnp.float32)                     # bf16 -> f32 in-register
    a2 = jnp.maximum(scale2 * h1 + shift2, 0.0)
    h2 = jnp.dot(w_ref[...], a2, preferred_element_type=jnp.float32) + bias2
    res = jnp.maximum(scale_r * x_ref[...] + shift_r, 0.0)
    out_ref[...] = (h2 + res).astype(out_ref.dtype)


# --------------------------- wrapper -----------------------------------------


def _scale_shift(gamma, beta, mean, var):
    """Fold BatchNorm affine into per-channel scale/shift vectors."""
    inv = lax.rsqrt(var + EPS)
    scale = gamma * inv
    shift = beta - mean * scale
    return scale, shift


def _finalize_stats(psum, psumsq, m):
    s = jnp.sum(psum, axis=(0, 1))[:, 0]        # (C,)
    ss = jnp.sum(psumsq, axis=(0, 1))[:, 0]     # (C,)
    mean = s / m
    var = jnp.maximum(ss / m - mean * mean, 0.0)  # biased (training-mode) var
    return mean, var


def resnet_block_forward(x, params, *, l_tile=None):
    """x: (B, C, L) float32.  Returns (B, C, L) float32."""
    b, c, l = x.shape
    m = b * l

    lt = _pick_l_tile(l, c, l_tile)
    n_l = pl.cdiv(l, lt)
    l_pad = n_l * lt
    needs_pad = l_pad > l

    # Zero-pad the ragged L tail (no-op at tile-multiple L).  No transposes:
    # C sits on sublanes, L on the lane axis; Lt is a multiple of 128.
    x_p = jnp.pad(x, ((0, 0), (0, 0), (0, l_pad - l))) if needs_pad else x

    grid = (b, n_l)
    tile_spec = pl.BlockSpec((pl.Squeezed(), c, lt), lambda i, j: (i, 0, j))
    mat_spec = pl.BlockSpec((c, c), lambda i, j: (0, 0))
    par_spec = pl.BlockSpec((c, 8), lambda i, j: (0, 0))
    stat_spec = pl.BlockSpec((pl.Squeezed(), pl.Squeezed(), c, 1),
                             lambda i, j: (i, j, 0, 0))
    stat_shape = jax.ShapeDtypeStruct((b, n_l, c, 1), jnp.float32)

    cparams = pltpu.CompilerParams(
        dimension_semantics=("parallel", "parallel"),
        vmem_limit_bytes=VMEM_LIMIT_BYTES)

    zc = jnp.zeros((c,), jnp.float32)

    # ---- pass 1: per-tile partial sum / sum-of-squares of x ------------------
    xsum, xsumsq = pl.pallas_call(
        _x_stats_kernel,
        out_shape=(stat_shape, stat_shape),
        grid=grid,
        in_specs=[tile_spec],
        out_specs=(stat_spec, stat_spec),
        compiler_params=cparams,
    )(x_p)
    mean_x, var_x = _finalize_stats(xsum, xsumsq, m)

    scale1, shift1 = _scale_shift(params["bn1_gamma"], params["bn1_beta"],
                                  mean_x, var_x)
    scale_r, shift_r = _scale_shift(params["bnr_gamma"], params["bnr_beta"],
                                    mean_x, var_x)
    p2 = jnp.stack([scale1, shift1, params["b1"], zc, zc, zc, zc, zc], axis=1)

    # ---- pass 2: h1 = conv1(relu(BN1(x))) (bf16) + partial h1 statistics -----
    h1, hsum, hsumsq = pl.pallas_call(
        functools.partial(_norm_conv_stats_kernel,
                          mask_cols=needs_pad, l_true=l, l_tile=lt),
        out_shape=(jax.ShapeDtypeStruct((b, c, l_pad), jnp.bfloat16),
                   stat_shape, stat_shape),
        grid=grid,
        in_specs=[tile_spec, mat_spec, par_spec],
        out_specs=(tile_spec, stat_spec, stat_spec),
        compiler_params=cparams,
    )(x_p, params["w1"], p2)
    mean_h, var_h = _finalize_stats(hsum, hsumsq, m)

    scale2, shift2 = _scale_shift(params["bn2_gamma"], params["bn2_beta"],
                                  mean_h, var_h)
    p3 = jnp.stack([scale2, shift2, params["b2"], scale_r, shift_r,
                    zc, zc, zc], axis=1)

    # ---- pass 3: out = conv2(relu(BN2(h1))) + relu(BN_r(x)) -------------------
    out = pl.pallas_call(
        _norm_conv_residual_kernel,
        out_shape=jax.ShapeDtypeStruct((b, c, l_pad), jnp.float32),
        grid=grid,
        in_specs=[tile_spec, tile_spec, mat_spec, par_spec],
        out_specs=tile_spec,
        compiler_params=cparams,
    )(x_p, h1, params["w2"], p3)

    if needs_pad:
        out = out[:, :, :l]
    return out


# --------------------------- pure-JAX reference -------------------------------


def resnet_block_ref(x, params):
    def bn_relu(v, g, bb):
        mean = jnp.mean(v, axis=(0, 2), keepdims=True)
        var = jnp.mean((v - mean) ** 2, axis=(0, 2), keepdims=True)
        y = (v - mean) * lax.rsqrt(var + EPS) * g[None, :, None] + bb[None, :, None]
        return jnp.maximum(y, 0.0)

    res = bn_relu(x, params["bnr_gamma"], params["bnr_beta"])
    a1 = bn_relu(x, params["bn1_gamma"], params["bn1_beta"])
    h1 = jnp.einsum("oc,bcl->bol", params["w1"], a1,
                    precision=lax.Precision.HIGHEST) + params["b1"][None, :, None]
    a2 = bn_relu(h1, params["bn2_gamma"], params["bn2_beta"])
    h2 = jnp.einsum("oc,bcl->bol", params["w2"], a2,
                    precision=lax.Precision.HIGHEST) + params["b2"][None, :, None]
    return h2 + res


if __name__ == "__main__":
    dim = 32        # hidden channels (dim == dim_out, as the module requires)
    batch = 2
    length = 600    # deliberately ragged: exercises cdiv grid + padded/masked tail

    key = jax.random.PRNGKey(0)
    keys = jax.random.split(key, 5)
    x = jax.random.normal(keys[0], (batch, dim, length), dtype=jnp.float32)

    ar = jnp.arange(dim, dtype=jnp.float32)
    params = {
        # block1: Conv1d(dim, dim, 1) + its SimpleNorm (BatchNorm1d) affine
        "w1": 0.3 * jax.random.normal(keys[1], (dim, dim), dtype=jnp.float32),
        "b1": 0.1 * jax.random.normal(keys[2], (dim,), dtype=jnp.float32),
        "bn1_gamma": 1.0 + 0.02 * ar,
        "bn1_beta": 0.05 * ar - 0.4,
        # block2
        "w2": 0.3 * jax.random.normal(keys[3], (dim, dim), dtype=jnp.float32),
        "b2": 0.1 * jax.random.normal(keys[4], (dim,), dtype=jnp.float32),
        "bn2_gamma": 1.0 - 0.01 * ar,
        "bn2_beta": 0.03 * ar - 0.2,
        # res_norm (residual_conv is Identity since dim == dim_out)
        "bnr_gamma": 1.0 + 0.015 * ar,
        "bnr_beta": 0.1 - 0.02 * ar,
    }

    # Small l_tile override so the demo exercises multiple L tiles plus the
    # padded/masked tail; production use leaves l_tile=None (auto ~2 MiB tile).
    fwd = jax.jit(functools.partial(resnet_block_forward, l_tile=256))
    out = jax.block_until_ready(fwd(x, params))

    ref = resnet_block_ref(x, params)
    assert out.shape == (batch, dim, length)
    max_err = jnp.max(jnp.abs(out - ref))
    assert jnp.allclose(out, ref, atol=2e-2, rtol=2e-2), (
        f"mismatch vs reference, max abs err = {max_err}")

    print("KERNEL_OK")
</pallas_src>

<mosaic_0001>
module attributes {stable_mosaic.version = 11 : i64} {
  func.func @_x_stats_kernel(%arg0: i32, %arg1: i32, %arg2: memref<1x32x256xf32, #tpu.memory_space<vmem>>, %arg3: memref<1x1x32x1xf32, #tpu.memory_space<vmem>>, %arg4: memref<1x1x32x1xf32, #tpu.memory_space<vmem>>) attributes {dimension_semantics = [#tpu.dimension_semantics<parallel>, #tpu.dimension_semantics<parallel>], iteration_bounds = array<i64: 2, 3>, scalar_prefetch = 0 : i64, scratch_operands = 0 : i64, tpu.core_type = #tpu.core_type<tc>, window_params = [{transform_indices = @transform_0, window_bounds = array<i64: 1, 32, 256>}, {transform_indices = @transform_1, window_bounds = array<i64: 1, 1, 32, 1>}, {transform_indices = @transform_2, window_bounds = array<i64: 1, 1, 32, 1>}]} {
    %c0 = arith.constant 0 : index
    %c0_0 = arith.constant 0 : index
    %c0_1 = arith.constant 0 : index
    %0 = vector.load %arg2[%c0, %c0_0, %c0_1] : memref<1x32x256xf32, #tpu.memory_space<vmem>>, vector<1x32x256xf32>
    %1 = vector.shape_cast %0 : vector<1x32x256xf32> to vector<32x256xf32>
    %cst = arith.constant dense<0.000000e+00> : vector<32xf32>
    %2 = vector.multi_reduction <add>, %1, %cst [1] : vector<32x256xf32> to vector<32xf32>
    %3 = vector.shape_cast %2 : vector<32xf32> to vector<32x1xf32>
    %c0_2 = arith.constant 0 : index
    %c0_3 = arith.constant 0 : index
    %c0_4 = arith.constant 0 : index
    %c0_5 = arith.constant 0 : index
    %4 = vector.load %arg3[%c0_2, %c0_3, %c0_4, %c0_5] : memref<1x1x32x1xf32, #tpu.memory_space<vmem>>, vector<1x1x32x1xf32>
    %5 = vector.shape_cast %4 : vector<1x1x32x1xf32> to vector<32x1xf32>
    %6 = vector.shape_cast %3 : vector<32x1xf32> to vector<1x1x32x1xf32>
    tpu.vector_store %arg3[%c0_2, %c0_3, %c0_4, %c0_5], %6 {strides = array<i32>} : memref<1x1x32x1xf32, #tpu.memory_space<vmem>>, vector<1x1x32x1xf32>,
    %7 = arith.mulf %1, %1 : vector<32x256xf32>
    %cst_6 = arith.constant dense<0.000000e+00> : vector<32xf32>
    %8 = vector.multi_reduction <add>, %7, %cst_6 [1] : vector<32x256xf32> to vector<32xf32>
    %9 = vector.shape_cast %8 : vector<32xf32> to vector<32x1xf32>
    %c0_7 = arith.constant 0 : index
    %c0_8 = arith.constant 0 : index
    %c0_9 = arith.constant 0 : index
    %c0_10 = arith.constant 0 : index
    %10 = vector.load %arg4[%c0_7, %c0_8, %c0_9, %c0_10] : memref<1x1x32x1xf32, #tpu.memory_space<vmem>>, vector<1x1x32x1xf32>
    %11 = vector.shape_cast %10 : vector<1x1x32x1xf32> to vector<32x1xf32>
    %12 = vector.shape_cast %9 : vector<32x1xf32> to vector<1x1x32x1xf32>
    tpu.vector_store %arg4[%c0_7, %c0_8, %c0_9, %c0_10], %12 {strides = array<i32>} : memref<1x1x32x1xf32, #tpu.memory_space<vmem>>, vector<1x1x32x1xf32>,
    return
  }
  func.func @transform_0(%arg0: i32, %arg1: i32) -> (i32, i32, i32) {
    %c0_i32 = arith.constant 0 : i32
    %c0_i32_0 = arith.constant 0 : i32
    return %arg0, %c0_i32, %arg1 : i32, i32, i32
  }
  func.func @transform_1(%arg0: i32, %arg1: i32) -> (i32, i32, i32, i32) {
    %c0_i32 = arith.constant 0 : i32
    %c0_i32_0 = arith.constant 0 : i32
    %c0_i32_1 = arith.constant 0 : i32
    return %arg0, %arg1, %c0_i32, %c0_i32_0 : i32, i32, i32, i32
  }
  func.func @transform_2(%arg0: i32, %arg1: i32) -> (i32, i32, i32, i32) {
    %c0_i32 = arith.constant 0 : i32
    %c0_i32_0 = arith.constant 0 : i32
    %c0_i32_1 = arith.constant 0 : i32
    return %arg0, %arg1, %c0_i32, %c0_i32_0 : i32, i32, i32, i32
  }
}

module attributes {stable_mosaic.version = 11 : i64} {
  func.func @_norm_conv_stats_kernel(%arg0: i32, %arg1: i32, %arg2: memref<1x32x256xf32, #tpu.memory_space<vmem>>, %arg3: memref<32x32xf32, #tpu.memory_space<vmem>>, %arg4: memref<32x8xf32, #tpu.memory_space<vmem>>, %arg5: memref<1x32x256xbf16, #tpu.memory_space<vmem>>, %arg6: memref<1x1x32x1xf32, #tpu.memory_space<vmem>>, %arg7: memref<1x1x32x1xf32, #tpu.memory_space<vmem>>) attributes {dimension_semantics = [#tpu.dimension_semantics<parallel>, #tpu.dimension_semantics<parallel>], iteration_bounds = array<i64: 2, 3>, scalar_prefetch = 0 : i64, scratch_operands = 0 : i64, tpu.core_type = #tpu.core_type<tc>, window_params = [{transform_indices = @transform_0, window_bounds = array<i64: 1, 32, 256>}, {pipeline_mode = #tpu.pipeline_mode<synchronous>, transform_indices = @transform_1, window_bounds = array<i64: 32, 32>}, {pipeline_mode = #tpu.pipeline_mode<synchronous>, transform_indices = @transform_2, window_bounds = array<i64: 32, 8>}, {transform_indices = @transform_3, window_bounds = array<i64: 1, 32, 256>}, {transform_indices = @transform_4, window_bounds = array<i64: 1, 1, 32, 1>}, {transform_indices = @transform_5, window_bounds = array<i64: 1, 1, 32, 1>}]} {
    %c0 = arith.constant 0 : index
    %c0_0 = arith.constant 0 : index
    %0 = vector.load %arg4[%c0, %c0_0] : memref<32x8xf32, #tpu.memory_space<vmem>>, vector<32x8xf32>
    %1 = vector.extract_strided_slice %0 {offsets = [0, 0], sizes = [32, 1], strides = [1, 1]} : vector<32x8xf32> to vector<32x1xf32>
    %2 = vector.extract_strided_slice %0 {offsets = [0, 1], sizes = [32, 1], strides = [1, 1]} : vector<32x8xf32> to vector<32x1xf32>
    %3 = vector.extract_strided_slice %0 {offsets = [0, 2], sizes = [32, 1], strides = [1, 1]} : vector<32x8xf32> to vector<32x1xf32>
    %c0_1 = arith.constant 0 : index
    %c0_2 = arith.constant 0 : index
    %c0_3 = arith.constant 0 : index
    %4 = vector.load %arg2[%c0_1, %c0_2, %c0_3] : memref<1x32x256xf32, #tpu.memory_space<vmem>>, vector<1x32x256xf32>
    %5 = vector.shape_cast %4 : vector<1x32x256xf32> to vector<32x256xf32>
    %6 = vector.broadcast %1 : vector<32x1xf32> to vector<32x256xf32>
    %7 = arith.mulf %6, %5 : vector<32x256xf32>
    %8 = vector.broadcast %2 : vector<32x1xf32> to vector<32x256xf32>
    %9 = arith.addf %7, %8 : vector<32x256xf32>
    %cst = arith.constant 0.000000e+00 : f32
    %10 = vector.broadcast %cst : f32 to vector<32x256xf32>
    %11 = arith.maximumf %9, %10 : vector<32x256xf32>
    %c0_4 = arith.constant 0 : index
    %c0_5 = arith.constant 0 : index
    %12 = vector.load %arg3[%c0_4, %c0_5] : memref<32x32xf32, #tpu.memory_space<vmem>>, vector<32x32xf32>
    %cst_6 = arith.constant dense<0.000000e+00> : vector<32x256xf32>
    %13 = tpu.matmul %12, %11, %cst_6 {dimension_numbers = #tpu.dot_dimension_numbers<[1], [0], [0], [1], [0, 0, 1, 1], [], []>} : vector<32x32xf32>, vector<32x256xf32>, vector<32x256xf32> -> vector<32x256xf32>
    %14 = vector.broadcast %3 : vector<32x1xf32> to vector<32x256xf32>
    %15 = arith.addf %13, %14 : vector<32x256xf32>
    %16 = arith.truncf %15 : vector<32x256xf32> to vector<32x256xbf16>
    %c0_7 = arith.constant 0 : index
    %c0_8 = arith.constant 0 : index
    %c0_9 = arith.constant 0 : index
    %17 = vector.load %arg5[%c0_7, %c0_8, %c0_9] : memref<1x32x256xbf16, #tpu.memory_space<vmem>>, vector<1x32x256xbf16>
    %18 = vector.shape_cast %17 : vector<1x32x256xbf16> to vector<32x256xbf16>
    %19 = vector.shape_cast %16 : vector<32x256xbf16> to vector<1x32x256xbf16>
    tpu.vector_store %arg5[%c0_7, %c0_8, %c0_9], %19 {strides = array<i32>} : memref<1x32x256xbf16, #tpu.memory_space<vmem>>, vector<1x32x256xbf16>,
    %c256_i32 = arith.constant 256 : i32
    %20 = arith.muli %arg1, %c256_i32 : i32
    %21 = tpu.iota {dimensions = array<i32: 1>} : vector<32x256xi32>
    %22 = vector.broadcast %20 : i32 to vector<32x256xi32>
    %23 = arith.addi %22, %21 : vector<32x256xi32>
    %c600_i32 = arith.constant 600 : i32
    %24 = vector.broadcast %c600_i32 : i32 to vector<32x256xi32>
    %25 = arith.cmpi slt, %23, %24 : vector<32x256xi32>
    %cst_10 = arith.constant 0.000000e+00 : f32
    %26 = vector.broadcast %cst_10 : f32 to vector<32x256xf32>
    %27 = arith.select %25, %15, %26 : vector<32x256xi1>, vector<32x256xf32>
    %cst_11 = arith.constant dense<0.000000e+00> : vector<32xf32>
    %28 = vector.multi_reduction <add>, %27, %cst_11 [1] : vector<32x256xf32> to vector<32xf32>
    %29 = vector.shape_cast %28 : vector<32xf32> to vector<32x1xf32>
    %c0_12 = arith.constant 0 : index
    %c0_13 = arith.constant 0 : index
    %c0_14 = arith.constant 0 : index
    %c0_15 = arith.constant 0 : index
    %30 = vector.load %arg6[%c0_12, %c0_13, %c0_14, %c0_15] : memref<1x1x32x1xf32, #tpu.memory_space<vmem>>, vector<1x1x32x1xf32>
    %31 = vector.shape_cast %30 : vector<1x1x32x1xf32> to vector<32x1xf32>
    %32 = vector.shape_cast %29 : vector<32x1xf32> to vector<1x1x32x1xf32>
    tpu.vector_store %arg6[%c0_12, %c0_13, %c0_14, %c0_15], %32 {strides = array<i32>} : memref<1x1x32x1xf32, #tpu.memory_space<vmem>>, vector<1x1x32x1xf32>,
    %33 = arith.mulf %27, %27 : vector<32x256xf32>
    %cst_16 = arith.constant dense<0.000000e+00> : vector<32xf32>
    %34 = vector.multi_reduction <add>, %33, %cst_16 [1] : vector<32x256xf32> to vector<32xf32>
    %35 = vector.shape_cast %34 : vector<32xf32> to vector<32x1xf32>
    %c0_17 = arith.constant 0 : index
    %c0_18 = arith.constant 0 : index
    %c0_19 = arith.constant 0 : index
    %c0_20 = arith.constant 0 : index
    %36 = vector.load %arg7[%c0_17, %c0_18, %c0_19, %c0_20] : memref<1x1x32x1xf32, #tpu.memory_space<vmem>>, vector<1x1x32x1xf32>
    %37 = vector.shape_cast %36 : vector<1x1x32x1xf32> to vector<32x1xf32>
    %38 = vector.shape_cast %35 : vector<32x1xf32> to vector<1x1x32x1xf32>
    tpu.vector_store %arg7[%c0_17, %c0_18, %c0_19, %c0_20], %38 {strides = array<i32>} : memref<1x1x32x1xf32, #tpu.memory_space<vmem>>, vector<1x1x32x1xf32>,
    return
  }
  func.func @transform_0(%arg0: i32, %arg1: i32) -> (i32, i32, i32) {
    %c0_i32 = arith.constant 0 : i32
    %c0_i32_0 = arith.constant 0 : i32
    return %arg0, %c0_i32, %arg1 : i32, i32, i32
  }
  func.func @transform_1(%arg0: i32, %arg1: i32) -> (i32, i32) {
    %c0_i32 = arith.constant 0 : i32
    %c0_i32_0 = arith.constant 0 : i32
    %c0_i32_1 = arith.constant 0 : i32
    return %c0_i32, %c0_i32_0 : i32, i32
  }
  func.func @transform_2(%arg0: i32, %arg1: i32) -> (i32, i32) {
    %c0_i32 = arith.constant 0 : i32
    %c0_i32_0 = arith.constant 0 : i32
    %c0_i32_1 = arith.constant 0 : i32
    return %c0_i32, %c0_i32_0 : i32, i32
  }
  func.func @transform_3(%arg0: i32, %arg1: i32) -> (i32, i32, i32) {
    %c0_i32 = arith.constant 0 : i32
    %c0_i32_0 = arith.constant 0 : i32
    return %arg0, %c0_i32, %arg1 : i32, i32, i32
  }
  func.func @transform_4(%arg0: i32, %arg1: i32) -> (i32, i32, i32, i32) {
    %c0_i32 = arith.constant 0 : i32
    %c0_i32_0 = arith.constant 0 : i32
    %c0_i32_1 = arith.constant 0 : i32
    return %arg0, %arg1, %c0_i32, %c0_i32_0 : i32, i32, i32, i32
  }
  func.func @transform_5(%arg0: i32, %arg1: i32) -> (i32, i32, i32, i32) {
    %c0_i32 = arith.constant 0 : i32
    %c0_i32_0 = arith.constant 0 : i32
    %c0_i32_1 = arith.constant 0 : i32
    return %arg0, %arg1, %c0_i32, %c0_i32_0 : i32, i32, i32, i32
  }
}

module attributes {stable_mosaic.version = 11 : i64} {
  func.func @_norm_conv_residual_kernel(%arg0: i32, %arg1: i32, %arg2: memref<1x32x256xf32, #tpu.memory_space<vmem>>, %arg3: memref<1x32x256xbf16, #tpu.memory_space<vmem>>, %arg4: memref<32x32xf32, #tpu.memory_space<vmem>>, %arg5: memref<32x8xf32, #tpu.memory_space<vmem>>, %arg6: memref<1x32x256xf32, #tpu.memory_space<vmem>>) attributes {dimension_semantics = [#tpu.dimension_semantics<parallel>, #tpu.dimension_semantics<parallel>], iteration_bounds = array<i64: 2, 3>, scalar_prefetch = 0 : i64, scratch_operands = 0 : i64, tpu.core_type = #tpu.core_type<tc>, window_params = [{transform_indices = @transform_0, window_bounds = array<i64: 1, 32, 256>}, {transform_indices = @transform_1, window_bounds = array<i64: 1, 32, 256>}, {pipeline_mode = #tpu.pipeline_mode<synchronous>, transform_indices = @transform_2, window_bounds = array<i64: 32, 32>}, {pipeline_mode = #tpu.pipeline_mode<synchronous>, transform_indices = @transform_3, window_bounds = array<i64: 32, 8>}, {transform_indices = @transform_4, window_bounds = array<i64: 1, 32, 256>}]} {
    %c0 = arith.constant 0 : index
    %c0_0 = arith.constant 0 : index
    %0 = vector.load %arg5[%c0, %c0_0] : memref<32x8xf32, #tpu.memory_space<vmem>>, vector<32x8xf32>
    %1 = vector.extract_strided_slice %0 {offsets = [0, 0], sizes = [32, 1], strides = [1, 1]} : vector<32x8xf32> to vector<32x1xf32>
    %2 = vector.extract_strided_slice %0 {offsets = [0, 1], sizes = [32, 1], strides = [1, 1]} : vector<32x8xf32> to vector<32x1xf32>
    %3 = vector.extract_strided_slice %0 {offsets = [0, 2], sizes = [32, 1], strides = [1, 1]} : vector<32x8xf32> to vector<32x1xf32>
    %4 = vector.extract_strided_slice %0 {offsets = [0, 3], sizes = [32, 1], strides = [1, 1]} : vector<32x8xf32> to vector<32x1xf32>
    %5 = vector.extract_strided_slice %0 {offsets = [0, 4], sizes = [32, 1], strides = [1, 1]} : vector<32x8xf32> to vector<32x1xf32>
    %c0_1 = arith.constant 0 : index
    %c0_2 = arith.constant 0 : index
    %c0_3 = arith.constant 0 : index
    %6 = vector.load %arg3[%c0_1, %c0_2, %c0_3] : memref<1x32x256xbf16, #tpu.memory_space<vmem>>, vector<1x32x256xbf16>
    %7 = vector.shape_cast %6 : vector<1x32x256xbf16> to vector<32x256xbf16>
    %8 = arith.extf %7 : vector<32x256xbf16> to vector<32x256xf32>
    %9 = vector.broadcast %1 : vector<32x1xf32> to vector<32x256xf32>
    %10 = arith.mulf %9, %8 : vector<32x256xf32>
    %11 = vector.broadcast %2 : vector<32x1xf32> to vector<32x256xf32>
    %12 = arith.addf %10, %11 : vector<32x256xf32>
    %cst = arith.constant 0.000000e+00 : f32
    %13 = vector.broadcast %cst : f32 to vector<32x256xf32>
    %14 = arith.maximumf %12, %13 : vector<32x256xf32>
    %c0_4 = arith.constant 0 : index
    %c0_5 = arith.constant 0 : index
    %15 = vector.load %arg4[%c0_4, %c0_5] : memref<32x32xf32, #tpu.memory_space<vmem>>, vector<32x32xf32>
    %cst_6 = arith.constant dense<0.000000e+00> : vector<32x256xf32>
    %16 = tpu.matmul %15, %14, %cst_6 {dimension_numbers = #tpu.dot_dimension_numbers<[1], [0], [0], [1], [0, 0, 1, 1], [], []>} : vector<32x32xf32>, vector<32x256xf32>, vector<32x256xf32> -> vector<32x256xf32>
    %17 = vector.broadcast %3 : vector<32x1xf32> to vector<32x256xf32>
    %18 = arith.addf %16, %17 : vector<32x256xf32>
    %c0_7 = arith.constant 0 : index
    %c0_8 = arith.constant 0 : index
    %c0_9 = arith.constant 0 : index
    %19 = vector.load %arg2[%c0_7, %c0_8, %c0_9] : memref<1x32x256xf32, #tpu.memory_space<vmem>>, vector<1x32x256xf32>
    %20 = vector.shape_cast %19 : vector<1x32x256xf32> to vector<32x256xf32>
    %21 = vector.broadcast %4 : vector<32x1xf32> to vector<32x256xf32>
    %22 = arith.mulf %21, %20 : vector<32x256xf32>
    %23 = vector.broadcast %5 : vector<32x1xf32> to vector<32x256xf32>
    %24 = arith.addf %22, %23 : vector<32x256xf32>
    %cst_10 = arith.constant 0.000000e+00 : f32
    %25 = vector.broadcast %cst_10 : f32 to vector<32x256xf32>
    %26 = arith.maximumf %24, %25 : vector<32x256xf32>
    %27 = arith.addf %18, %26 : vector<32x256xf32>
    %c0_11 = arith.constant 0 : index
    %c0_12 = arith.constant 0 : index
    %c0_13 = arith.constant 0 : index
    %28 = vector.load %arg6[%c0_11, %c0_12, %c0_13] : memref<1x32x256xf32, #tpu.memory_space<vmem>>, vector<1x32x256xf32>
    %29 = vector.shape_cast %28 : vector<1x32x256xf32> to vector<32x256xf32>
    %30 = vector.shape_cast %27 : vector<32x256xf32> to vector<1x32x256xf32>
    tpu.vector_store %arg6[%c0_11, %c0_12, %c0_13], %30 {strides = array<i32>} : memref<1x32x256xf32, #tpu.memory_space<vmem>>, vector<1x32x256xf32>,
    return
  }
  func.func @transform_0(%arg0: i32, %arg1: i32) -> (i32, i32, i32) {
    %c0_i32 = arith.constant 0 : i32
    %c0_i32_0 = arith.constant 0 : i32
    return %arg0, %c0_i32, %arg1 : i32, i32, i32
  }
  func.func @transform_1(%arg0: i32, %arg1: i32) -> (i32, i32, i32) {
    %c0_i32 = arith.constant 0 : i32
    %c0_i32_0 = arith.constant 0 : i32
    return %arg0, %c0_i32, %arg1 : i32, i32, i32
  }
  func.func @transform_2(%arg0: i32, %arg1: i32) -> (i32, i32) {
    %c0_i32 = arith.constant 0 : i32
    %c0_i32_0 = arith.constant 0 : i32
    %c0_i32_1 = arith.constant 0 : i32
    return %c0_i32, %c0_i32_0 : i32, i32
  }
  func.func @transform_3(%arg0: i32, %arg1: i32) -> (i32, i32) {
    %c0_i32 = arith.constant 0 : i32
    %c0_i32_0 = arith.constant 0 : i32
    %c0_i32_1 = arith.constant 0 : i32
    return %c0_i32, %c0_i32_0 : i32, i32
  }
  func.func @transform_4(%arg0: i32, %arg1: i32) -> (i32, i32, i32) {
    %c0_i32 = arith.constant 0 : i32
    %c0_i32_0 = arith.constant 0 : i32
    return %arg0, %c0_i32, %arg1 : i32, i32, i32
  }
}

</mosaic_0001>

<llo_original>
// kernel: resnet_block_forward.3
$region0: #{resnet_block_forward.3}
  #allocation0 [shape = 'u32[]', space=smem, size = 0x4, offset = 0x4, fixed_abs, tag = 'smem constant byte address 0x4 - core index']
  #allocation1 [shape = 'u32[72,128]{1,0:T(1,128)}', space=vmem, size = 0x9000, scoped, tag = 'internal scratch']
  %s0 = inlined_call_operand.vmem [shape: f32[2,32,768], index: 0, kind: input, shape index: {}]
  %s1 = inlined_call_operand.vmem [shape: f32[2,3,32,1], index: 1, kind: output, shape index: {0}]
  %s2 = inlined_call_operand.vmem [shape: f32[2,3,32,1], index: 2, kind: output, shape index: {1}]
  %3 = xla_tuple %s1, %s2
  %s4 = sld [smem:[#allocation0]]
  $region68: #{resnet_block_forward.3} parent=0
    _
  %s6 = ssub.s32 1, %s4
  %s7 = scalar_select 0, %s6, %s4
  $region1: #{resnet_block_forward.3} parent=0
    #allocation2 [shape = 'u8[65536]{0}', space=vmem, size = 0x10000, scoped, tag = 'input window, operand 0']
    loop: start=0, step=1, limit=8
    $region2: #{resnet_block_forward.3} parent=1 // loop_pre_header
      _
    $region3: #{resnet_block_forward.3} parent=1 // loop_header
      %s9 = sphi 0, %s13
      %p10 = scmp.ge.s32.totalorder %s9, 8
      %s16 = sphi 0, %s28
      %s17 = sphi 0, %s24
      %s18 = sphi 0, %s16
      %s19 = sphi 0, %s17
      %s20 = sphi 0, %s18
      %s21 = sphi 0, %s19
      %s33 = sphi 0, %s35
      %s36 = sphi 0, %s33
      %s37 = sphi 0, %s36
      %s53 = sphi 0, %s37
      %s61 = sphi 0, %s63
      %s64 = sphi 0, %s61
      %s65 = sphi 0, %s64
      %s81 = sphi 0, %s65
      %s89 = sphi 0, %s91
      %s92 = sphi 0, %s89
      %s93 = sphi 0, %s92
      %s109 = sphi 0, %s93
    $region4: #{resnet_block_forward.3} parent=1 // loop_header_branch
      %12 = sbr.rel (%p10) target = $region8
    $region5: #{resnet_block_forward.3} parent=1 // loop_body
      %s14 = ssub.s32 %s9, 1
      %s15 = ssub.s32 %s9, 2
      %s22 = sadd.s32 1, %s17
      %p23 = scmp.ge.s32.totalorder %s22, 3
      %s24 = scalar_select %p23, 0, %s22
      %s25 = sadd.s32 1, %s16
      %s26 = scalar_select %p23, %s25, %s16
      %p27 = scmp.ge.s32.totalorder %s26, 2
      %s28 = scalar_select %p27, 0, %s26
      %s29 = ssub.s32 %s16, %s28
      %s30 = ssub.s32 %s17, %s24
      %s31 = sor.u32 %s29, %s30
      %p32 = scmp.eq.s32.totalorder %s31, 0
      %s34 = sadd.s32 %s33, 1
      %s35 = scalar_select %p32, %s33, %s34
      %p38 = pneg %p32
      %p39 = scmp.eq.s32.totalorder %s9, 5
      %p40 = por %p38, %p39
      %p41 = scmp.ne.s32.totalorder %s33, %s36
      %p42 = scmp.eq.s32.totalorder %s9, 0
      %p43 = por %p41, %p42
      %p44 = scmp.ne.s32.totalorder %s33, %s36
      %p45 = scmp.eq.s32.totalorder %s14, 5
      %p46 = por %p44, %p45
      %p47 = scmp.ne.s32.totalorder %s36, %s37
      %p48 = scmp.eq.s32.totalorder %s14, 0
      %p49 = por %p47, %p48
      %p50 = scmp.ne.s32.totalorder %s36, %s37
      %p51 = scmp.eq.s32.totalorder %s15, 5
      %p52 = por %p50, %p51
      %p54 = scmp.ne.s32.totalorder %s37, %s53
      %p55 = scmp.eq.s32.totalorder %s15, 0
      %p56 = por %p54, %p55
      %s57 = ssub.s32 %s16, %s28
      %s58 = ssub.s32 %s17, %s24
      %s59 = sor.u32 %s57, %s58
      %p60 = scmp.eq.s32.totalorder %s59, 0
      %s62 = sadd.s32 %s61, 1
      %s63 = scalar_select %p60, %s61, %s62
      %p66 = pneg %p60
      %p67 = scmp.eq.s32.totalorder %s9, 5
      %p68 = por %p66, %p67
      %p69 = scmp.ne.s32.totalorder %s61, %s64
      %p70 = scmp.eq.s32.totalorder %s9, 0
      %p71 = por %p69, %p70
      %p72 = scmp.ne.s32.totalorder %s61, %s64
      %p73 = scmp.eq.s32.totalorder %s14, 5
      %p74 = por %p72, %p73
      %p75 = scmp.ne.s32.totalorder %s64, %s65
      %p76 = scmp.eq.s32.totalorder %s14, 0
      %p77 = por %p75, %p76
      %p78 = scmp.ne.s32.totalorder %s64, %s65
      %p79 = scmp.eq.s32.totalorder %s15, 5
      %p80 = por %p78, %p79
      %p82 = scmp.ne.s32.totalorder %s65, %s81
      %p83 = scmp.eq.s32.totalorder %s15, 0
      %p84 = por %p82, %p83
      %s85 = ssub.s32 %s16, %s28
      %s86 = ssub.s32 %s17, %s24
      %s87 = sor.u32 %s85, %s86
      %p88 = scmp.eq.s32.totalorder %s87, 0
      %s90 = sadd.s32 %s89, 1
      %s91 = scalar_select %p88, %s89, %s90
      %p94 = pneg %p88
      %p95 = scmp.eq.s32.totalorder %s9, 5
      %p96 = por %p94, %p95
      %p97 = scmp.ne.s32.totalorder %s89, %s92
      %p98 = scmp.eq.s32.totalorder %s9, 0
      %p99 = por %p97, %p98
      %p100 = scmp.ne.s32.totalorder %s89, %s92
      %p101 = scmp.eq.s32.totalorder %s14, 5
      %p102 = por %p100, %p101
      %p103 = scmp.ne.s32.totalorder %s92, %s93
      %p104 = scmp.eq.s32.totalorder %s14, 0
      %p105 = por %p103, %p104
      %p106 = scmp.ne.s32.totalorder %s92, %s93
      %p107 = scmp.eq.s32.totalorder %s15, 5
      %p108 = por %p106, %p107
      %p110 = scmp.ne.s32.totalorder %s93, %s109
      %p111 = scmp.eq.s32.totalorder %s15, 0
      %p112 = por %p110, %p111
      %p113 = scmp.le.s32.totalorder 1, %s9
      %p114 = scmp.lt.s32.totalorder %s9, 7
      %p115 = pnand %p113, %p114
      %p116 = pneg %p115
      // Predicated region
      $region9: #{resnet_block_forward.3} parent=5 // pred_check
        _
      $region10: #{resnet_block_forward.3} parent=5 // pred_check_branch
        %118 = sbr.rel (%p115) target = $region12
      $region11: #{resnet_block_forward.3} parent=5 // pred_region
        %s119 = ssub.s32 %s9, 1
      $region12: #{resnet_block_forward.3} parent=5 // pred_fallthru
        _
      %p120 = scmp.lt.s32.totalorder %s9, 6
      // Predicated region
      $region13: #{resnet_block_forward.3} parent=5 // pred_check
        %p121 = pneg %p120
      $region14: #{resnet_block_forward.3} parent=5 // pred_check_branch
        %123 = sbr.rel (%p121) target = $region16
      $region15: #{resnet_block_forward.3} parent=5 // pred_region
        // Predicated region
        $region17: #{resnet_block_forward.3} parent=15 // pred_check
          %p124 = pneg %p43
        $region18: #{resnet_block_forward.3} parent=15 // pred_check_branch
          %126 = sbr.rel (%p124) target = $region20
        $region19: #{resnet_block_forward.3} parent=15 // pred_region
          %s127 = sand.u32 %s33, 1
          %s128 = sand.u32 %s33, 1
          %s129 = smul.addr %s128, 64
          %s130 = scalar_lea.vmem [#allocation2], %s129
          %s131 = smul.u32 2, %s17
          %s132 = smul.addr %s16, 24
          %s133 = sadd.s32 %s131, %s132
          %s134 = smul.addr %s133, 8
          %s135 = scalar_lea.vmem %s0, %s134
          // Predicated region
          $region21: #{resnet_block_forward.3} parent=19 // pred_check
            _
          $region22: #{resnet_block_forward.3} parent=19 // pred_check_branch
            %137 = sbr.rel (0) target = $region24
          $region23: #{resnet_block_forward.3} parent=19 // pred_region
            // Predicated region
            $region25: #{resnet_block_forward.3} parent=23 // pred_check
              _
            $region26: #{resnet_block_forward.3} parent=23 // pred_check_branch
              %139 = sbr.rel (0) target = $region28
            $region27: #{resnet_block_forward.3} parent=23 // pred_region
              loop: start=0, step=1, limit=1
              $region29: #{resnet_block_forward.3} parent=27 // loop_pre_header
                _
              $region30: #{resnet_block_forward.3} parent=27 // loop_header
                %s141 = sphi 0, %s145
                %p142 = scmp.ge.s32.totalorder %s141, 1
                %s146 = sphi %s135, %s135
                %s147 = sphi %s130, %s130
              $region31: #{resnet_block_forward.3} parent=27 // loop_header_branch
                %144 = sbr.rel (%p142) target = $region35
              $region32: #{resnet_block_forward.3} parent=27 // loop_body
                %v148 = vld [vmem:[%s146] sm:$0xff]
                %149 = vst [vmem:[%s147] sm:$0xff] %v148
                %v150 = vld [vmem:[%s146 + $0x8] sm:$0xff]
                %151 = vst [vmem:[%s147 + $0x8] sm:$0xff] %v150
                %v152 = vld [vmem:[%s146 + $0x30] sm:$0xff]
                %153 = vst [vmem:[%s147 + $0x10] sm:$0xff] %v152
                %v154 = vld [vmem:[%s146 + $0x38] sm:$0xff]
                %155 = vst [vmem:[%s147 + $0x18] sm:$0xff] %v154
                %v156 = vld [vmem:[%s146 + $0x60] sm:$0xff]
                %157 = vst [vmem:[%s147 + $0x20] sm:$0xff] %v156
                %v158 = vld [vmem:[%s146 + $0x68] sm:$0xff]
                %159 = vst [vmem:[%s147 + $0x28] sm:$0xff] %v158
                %v160 = vld [vmem:[%s146 + $0x90] sm:$0xff]
                %161 = vst [vmem:[%s147 + $0x30] sm:$0xff] %v160
                %v162 = vld [vmem:[%s146 + $0x98] sm:$0xff]
                %163 = vst [vmem:[%s147 + $0x38] sm:$0xff] %v162
              $region33: #{resnet_block_forward.3} parent=27 // loop_footer
                %s145 = sadd.s32 1, %s141
              $region34: #{resnet_block_forward.3} parent=27 // loop_footer_branch
                %140 = sbr.rel target = $region30
              $region35: #{resnet_block_forward.3} parent=27 // loop_exit
                _
            $region28: #{resnet_block_forward.3} parent=23 // pred_fallthru
              _
            // Predicated region
            $region36: #{resnet_block_forward.3} parent=23 // pred_check
              _
            $region37: #{resnet_block_forward.3} parent=23 // pred_check_branch
              %165 = sbr.rel target = $region39
            $region38: #{resnet_block_forward.3} parent=23 // pred_region
              _
            $region39: #{resnet_block_forward.3} parent=23 // pred_fallthru
              _
          $region24: #{resnet_block_forward.3} parent=19 // pred_fallthru
            _
          %166 = vnop
        $region20: #{resnet_block_forward.3} parent=15 // pred_fallthru
          _
      $region16: #{resnet_block_forward.3} parent=5 // pred_fallthru
        _
      %p167 = scmp.le.s32.totalorder 1, %s9
      %p168 = scmp.lt.s32.totalorder %s9, 7
      %p169 = pnand %p167, %p168
      %p170 = pneg %p169
      // Predicated region
      $region40: #{resnet_block_forward.3} parent=5 // pred_check
        _
      $region41: #{resnet_block_forward.3} parent=5 // pred_check_branch
        %172 = sbr.rel (%p169) target = $region43
      $region42: #{resnet_block_forward.3} parent=5 // pred_region
        %s173 = ssub.s32 %s9, 1
        %s174 = sand.u32 %s36, 1
        %s175 = sand.u32 %s36, 1
        %s176 = smul.addr %s175, 64
        %s177 = scalar_lea.vmem [#allocation2], %s176
        // Predicated region
        $region44: #{resnet_block_forward.3} parent=42 // pred_check
          %p178 = pneg %p49
        $region45: #{resnet_block_forward.3} parent=42 // pred_check_branch
          %180 = sbr.rel (%p178) target = $region47
        $region46: #{resnet_block_forward.3} parent=42 // pred_region
          _
        $region47: #{resnet_block_forward.3} parent=42 // pred_fallthru
          _
        %s181 = sand.u32 %s36, 1
        %s182 = sand.u32 %s36, 1
        %s183 = smul.addr %s182, 64
        %s184 = scalar_lea.vmem [#allocation2], %s183
        %p185 = pneg %p49
        %p186 = pneg %p46
        %p187 = pneg %p77
        %p188 = pneg %p74
        %p189 = scmp.lt.s32.totalorder %s18, 1
        %s190 = scalar_select %p189, %s18, 1
        %p191 = scmp.lt.s32.totalorder %s19, 2
        %s192 = scalar_select %p191, %s19, 2
        %s193 = smul.addr %s192, 4
        %s194 = smul.addr %s190, 12
        %s195 = sadd.s32 %s193, %s194
        %s196 = smul.addr %s195, 8
        %s197 = scalar_lea.vmem %s1, %s196
        %p198 = pneg %p105
        %p199 = pneg %p102
        %p200 = scmp.lt.s32.totalorder %s18, 1
        %s201 = scalar_select %p200, %s18, 1
        %p202 = scmp.lt.s32.totalorder %s19, 2
        %s203 = scalar_select %p202, %s19, 2
        %s204 = smul.addr %s203, 4
        %s205 = smul.addr %s201, 12
        %s206 = sadd.s32 %s204, %s205
        %s207 = smul.addr %s206, 8
        %s208 = scalar_lea.vmem %s2, %s207
        %s209 = smul.u32 2, %s19
        %p210 = scmp.lt.s32.totalorder %s18, 1
        %s211 = scalar_select %p210, %s18, 1
        %p212 = scmp.lt.s32.totalorder %s19, 2
        %s213 = scalar_select %p212, %s19, 2
        %s214 = smul.addr %s213, 4
        %s215 = smul.addr %s211, 12
        %s216 = sadd.s32 %s214, %s215
        %s217 = smul.addr %s216, 8
        %s218 = scalar_lea.vmem %s1, %s217
        %p219 = scmp.lt.s32.totalorder %s18, 1
        %s220 = scalar_select %p219, %s18, 1
        %p221 = scmp.lt.s32.totalorder %s19, 2
        %s222 = scalar_select %p221, %s19, 2
        %s223 = smul.addr %s222, 4
        %s224 = smul.addr %s220, 12
        %s225 = sadd.s32 %s223, %s224
        %s226 = smul.addr %s225, 8
        %s227 = scalar_lea.vmem %s2, %s226
        %v228 = vld [vmem:[%s177] sm:$0xff]
        %v229 = vld [vmem:[%s177 + $0x8] sm:$0xff]
        %v230 = vld [vmem:[%s177 + $0x10] sm:$0xff]
        %v231 = vld [vmem:[%s177 + $0x18] sm:$0xff]
        %v232 = vld [vmem:[%s177 + $0x20] sm:$0xff]
        %v233 = vld [vmem:[%s177 + $0x28] sm:$0xff]
        %v234 = vld [vmem:[%s177 + $0x30] sm:$0xff]
        %v235 = vld [vmem:[%s177 + $0x38] sm:$0xff]
        %v236 = vadd.f32 %v228, %v229
        %237 = vadd.xlane.f32.xlu0 %v236
        %v238 = vpop.xlane.xlu0 %237
        %v239 = vadd.f32 %v230, %v231
        %240 = vadd.xlane.f32.xlu0 %v239
        %v241 = vpop.xlane.xlu0 %240
        %v242 = vadd.f32 %v232, %v233
        %243 = vadd.xlane.f32.xlu0 %v242
        %v244 = vpop.xlane.xlu0 %243
        %v245 = vadd.f32 %v234, %v235
        %246 = vadd.xlane.f32.xlu0 %v245
        %v247 = vpop.xlane.xlu0 %246
        %vm248 = vcmask 7168
        %249 = vst.msk [vmem:[%s218] sm:$0xff] %vm248, %v238
        %250 = vst.msk [vmem:[%s218 + $0x8] sm:$0xff] %vm248, %v241
        %251 = vst.msk [vmem:[%s218 + $0x10] sm:$0xff] %vm248, %v244
        %252 = vst.msk [vmem:[%s218 + $0x18] sm:$0xff] %vm248, %v247
        %v253 = vmul.f32 %v228, %v228
        %v254 = vmul.f32 %v229, %v229
        %v255 = vmul.f32 %v230, %v230
        %v256 = vmul.f32 %v231, %v231
        %v257 = vmul.f32 %v232, %v232
        %v258 = vmul.f32 %v233, %v233
        %v259 = vmul.f32 %v234, %v234
        %v260 = vmul.f32 %v235, %v235
        %v261 = vadd.f32 %v253, %v254
        %262 = vadd.xlane.f32.xlu0 %v261
        %v263 = vpop.xlane.xlu0 %262
        %v264 = vadd.f32 %v255, %v256
        %265 = vadd.xlane.f32.xlu0 %v264
        %v266 = vpop.xlane.xlu0 %265
        %v267 = vadd.f32 %v257, %v258
        %268 = vadd.xlane.f32.xlu0 %v267
        %v269 = vpop.xlane.xlu0 %268
        %v270 = vadd.f32 %v259, %v260
        %271 = vadd.xlane.f32.xlu0 %v270
        %v272 = vpop.xlane.xlu0 %271
        %273 = vst.msk [vmem:[%s227] sm:$0xff] %vm248, %v263
        %274 = vst.msk [vmem:[%s227 + $0x8] sm:$0xff] %vm248, %v266
        %275 = vst.msk [vmem:[%s227 + $0x10] sm:$0xff] %vm248, %v269
        %276 = vst.msk [vmem:[%s227 + $0x18] sm:$0xff] %vm248, %v272
        %p277 = scmp.lt.s32.totalorder %s18, 1
        %s278 = scalar_select %p277, %s18, 1
        %p279 = scmp.lt.s32.totalorder %s19, 2
        %s280 = scalar_select %p279, %s19, 2
        %s281 = smul.addr %s280, 4
        %s282 = smul.addr %s278, 12
        %s283 = sadd.s32 %s281, %s282
        %s284 = smul.addr %s283, 8
        %s285 = scalar_lea.vmem %s1, %s284
        %p286 = scmp.lt.s32.totalorder %s18, 1
        %s287 = scalar_select %p286, %s18, 1
        %p288 = scmp.lt.s32.totalorder %s19, 2
        %s289 = scalar_select %p288, %s19, 2
        %s290 = smul.addr %s289, 4
        %s291 = smul.addr %s287, 12
        %s292 = sadd.s32 %s290, %s291
        %s293 = smul.addr %s292, 8
        %s294 = scalar_lea.vmem %s2, %s293
        // Predicated region
        $region48: #{resnet_block_forward.3} parent=42 // pred_check
          %p295 = pneg %p74
        $region49: #{resnet_block_forward.3} parent=42 // pred_check_branch
          %297 = sbr.rel (%p295) target = $region51
        $region50: #{resnet_block_forward.3} parent=42 // pred_region
          _
        $region51: #{resnet_block_forward.3} parent=42 // pred_fallthru
          _
        // Predicated region
        $region52: #{resnet_block_forward.3} parent=42 // pred_check
          %p298 = pneg %p102
        $region53: #{resnet_block_forward.3} parent=42 // pred_check_branch
          %300 = sbr.rel (%p298) target = $region55
        $region54: #{resnet_block_forward.3} parent=42 // pred_region
          _
        $region55: #{resnet_block_forward.3} parent=42 // pred_fallthru
          _
      $region43: #{resnet_block_forward.3} parent=5 // pred_fallthru
        _
      %p301 = scmp.le.s32.totalorder 2, %s9
      // Predicated region
      $region56: #{resnet_block_forward.3} parent=5 // pred_check
        %p302 = pneg %p301
      $region57: #{resnet_block_forward.3} parent=5 // pred_check_branch
        %304 = sbr.rel (%p302) target = $region59
      $region58: #{resnet_block_forward.3} parent=5 // pred_region
        %s305 = ssub.s32 %s9, 2
        // Predicated region
        $region60: #{resnet_block_forward.3} parent=58 // pred_check
          %p306 = pneg %p80
        $region61: #{resnet_block_forward.3} parent=58 // pred_check_branch
          %308 = sbr.rel (%p306) target = $region63
        $region62: #{resnet_block_forward.3} parent=58 // pred_region
          %p309 = scmp.lt.s32.totalorder %s20, 1
          %s310 = scalar_select %p309, %s20, 1
          %p311 = scmp.lt.s32.totalorder %s21, 2
          %s312 = scalar_select %p311, %s21, 2
          %s313 = smul.addr %s312, 4
          %s314 = smul.addr %s310, 12
          %s315 = sadd.s32 %s313, %s314
          %s316 = smul.addr %s315, 8
          %s317 = scalar_lea.vmem %s1, %s316
        $region63: #{resnet_block_forward.3} parent=58 // pred_fallthru
          _
        // Predicated region
        $region64: #{resnet_block_forward.3} parent=58 // pred_check
          %p318 = pneg %p108
        $region65: #{resnet_block_forward.3} parent=58 // pred_check_branch
          %320 = sbr.rel (%p318) target = $region67
        $region66: #{resnet_block_forward.3} parent=58 // pred_region
          %p321 = scmp.lt.s32.totalorder %s20, 1
          %s322 = scalar_select %p321, %s20, 1
          %p323 = scmp.lt.s32.totalorder %s21, 2
          %s324 = scalar_select %p323, %s21, 2
          %s325 = smul.addr %s324, 4
          %s326 = smul.addr %s322, 12
          %s327 = sadd.s32 %s325, %s326
          %s328 = smul.addr %s327, 8
          %s329 = scalar_lea.vmem %s2, %s328
        $region67: #{resnet_block_forward.3} parent=58 // pred_fallthru
          _
      $region59: #{resnet_block_forward.3} parent=5 // pred_fallthru
        _
    $region6: #{resnet_block_forward.3} parent=1 // loop_footer
      %s13 = sadd.s32 1, %s9
    $region7: #{resnet_block_forward.3} parent=1 // loop_footer_branch
      %8 = sbr.rel target = $region3
    $region8: #{resnet_block_forward.3} parent=1 // loop_exit
      _

// kernel: resnet_block_forward.4
$region0: #{resnet_block_forward.4}
  #allocation0 [shape = 'u32[]', space=smem, size = 0x4, offset = 0x4, fixed_abs, tag = 'smem constant byte address 0x4 - core index']
  #allocation1 [shape = 'u32[72,128]{1,0:T(1,128)}', space=vmem, size = 0x9000, scoped, tag = 'internal scratch']
  %s0 = inlined_call_operand.vmem [shape: f32[2,32,768], index: 0, kind: input, shape index: {}]
  %s1 = inlined_call_operand.vmem [shape: f32[32,32], index: 1, kind: input, shape index: {}]
  %s2 = inlined_call_operand.vmem [shape: f32[32,8], index: 2, kind: input, shape index: {}]
  %s3 = inlined_call_operand.vmem [shape: bf16[2,32,768], index: 3, kind: output, shape index: {0}]
  %s4 = inlined_call_operand.vmem [shape: f32[2,3,32,1], index: 4, kind: output, shape index: {1}]
  %s5 = inlined_call_operand.vmem [shape: f32[2,3,32,1], index: 5, kind: output, shape index: {2}]
  %6 = xla_tuple %s3, %s4, %s5
  %s7 = sld [smem:[#allocation0]]
  $region118: #{resnet_block_forward.4} parent=0
    _
  %s9 = ssub.s32 1, %s7
  %s10 = scalar_select 0, %s9, %s7
  $region1: #{resnet_block_forward.4} parent=0
    #allocation2 [shape = 'u8[65536]{0}', space=vmem, size = 0x10000, scoped, tag = 'input window, operand 0']
    #allocation3 [shape = 'u8[32768]{0}', space=vmem, size = 0x8000, scoped, tag = 'output window, operand 0']
    loop: start=0, step=1, limit=8
    $region2: #{resnet_block_forward.4} parent=1 // loop_pre_header
      _
    $region3: #{resnet_block_forward.4} parent=1 // loop_header
      %s12 = sphi 0, %s16
      %p13 = scmp.ge.s32.totalorder %s12, 8
      %s19 = sphi 0, %s31
      %s20 = sphi 0, %s27
      %s21 = sphi 0, %s19
      %s22 = sphi 0, %s20
      %s23 = sphi 0, %s21
      %s24 = sphi 0, %s22
      %s36 = sphi 0, %s38
      %s39 = sphi 0, %s36
      %s40 = sphi 0, %s39
      %s56 = sphi 0, %s40
      %s60 = sphi 0, %s60
      %s62 = sphi 0, %s60
      %s63 = sphi 0, %s62
      %s77 = sphi 0, %s63
      %s81 = sphi 0, %s81
      %s83 = sphi 0, %s81
      %s84 = sphi 0, %s83
      %s98 = sphi 0, %s84
      %s106 = sphi 0, %s108
      %s109 = sphi 0, %s106
      %s110 = sphi 0, %s109
      %s126 = sphi 0, %s110
      %s134 = sphi 0, %s136
      %s137 = sphi 0, %s134
      %s138 = sphi 0, %s137
      %s154 = sphi 0, %s138
      %s162 = sphi 0, %s164
      %s165 = sphi 0, %s162
      %s166 = sphi 0, %s165
      %s182 = sphi 0, %s166
    $region4: #{resnet_block_forward.4} parent=1 // loop_header_branch
      %15 = sbr.rel (%p13) target = $region8
    $region5: #{resnet_block_forward.4} parent=1 // loop_body
      %s17 = ssub.s32 %s12, 1
      %s18 = ssub.s32 %s12, 2
      %s25 = sadd.s32 1, %s20
      %p26 = scmp.ge.s32.totalorder %s25, 3
      %s27 = scalar_select %p26, 0, %s25
      %s28 = sadd.s32 1, %s19
      %s29 = scalar_select %p26, %s28, %s19
      %p30 = scmp.ge.s32.totalorder %s29, 2
      %s31 = scalar_select %p30, 0, %s29
      %s32 = ssub.s32 %s19, %s31
      %s33 = ssub.s32 %s20, %s27
      %s34 = sor.u32 %s32, %s33
      %p35 = scmp.eq.s32.totalorder %s34, 0
      %s37 = sadd.s32 %s36, 1
      %s38 = scalar_select %p35, %s36, %s37
      %p41 = pneg %p35
      %p42 = scmp.eq.s32.totalorder %s12, 5
      %p43 = por %p41, %p42
      %p44 = scmp.ne.s32.totalorder %s36, %s39
      %p45 = scmp.eq.s32.totalorder %s12, 0
      %p46 = por %p44, %p45
      %p47 = scmp.ne.s32.totalorder %s36, %s39
      %p48 = scmp.eq.s32.totalorder %s17, 5
      %p49 = por %p47, %p48
      %p50 = scmp.ne.s32.totalorder %s39, %s40
      %p51 = scmp.eq.s32.totalorder %s17, 0
      %p52 = por %p50, %p51
      %p53 = scmp.ne.s32.totalorder %s39, %s40
      %p54 = scmp.eq.s32.totalorder %s18, 5
      %p55 = por %p53, %p54
      %p57 = scmp.ne.s32.totalorder %s40, %s56
      %p58 = scmp.eq.s32.totalorder %s18, 0
      %p59 = por %p57, %p58
      %s61 = sadd.s32 %s60, 1
      %p64 = scmp.eq.s32.totalorder %s12, 5
      %p65 = scmp.ne.s32.totalorder %s60, %s62
      %p66 = scmp.eq.s32.totalorder %s12, 0
      %p67 = por %p65, %p66
      %p68 = scmp.ne.s32.totalorder %s60, %s62
      %p69 = scmp.eq.s32.totalorder %s17, 5
      %p70 = por %p68, %p69
      %p71 = scmp.ne.s32.totalorder %s62, %s63
      %p72 = scmp.eq.s32.totalorder %s17, 0
      %p73 = por %p71, %p72
      %p74 = scmp.ne.s32.totalorder %s62, %s63
      %p75 = scmp.eq.s32.totalorder %s18, 5
      %p76 = por %p74, %p75
      %p78 = scmp.ne.s32.totalorder %s63, %s77
      %p79 = scmp.eq.s32.totalorder %s18, 0
      %p80 = por %p78, %p79
      %s82 = sadd.s32 %s81, 1
      %p85 = scmp.eq.s32.totalorder %s12, 5
      %p86 = scmp.ne.s32.totalorder %s81, %s83
      %p87 = scmp.eq.s32.totalorder %s12, 0
      %p88 = por %p86, %p87
      %p89 = scmp.ne.s32.totalorder %s81, %s83
      %p90 = scmp.eq.s32.totalorder %s17, 5
      %p91 = por %p89, %p90
      %p92 = scmp.ne.s32.totalorder %s83, %s84
      %p93 = scmp.eq.s32.totalorder %s17, 0
      %p94 = por %p92, %p93
      %p95 = scmp.ne.s32.totalorder %s83, %s84
      %p96 = scmp.eq.s32.totalorder %s18, 5
      %p97 = por %p95, %p96
      %p99 = scmp.ne.s32.totalorder %s84, %s98
      %p100 = scmp.eq.s32.totalorder %s18, 0
      %p101 = por %p99, %p100
      %s102 = ssub.s32 %s19, %s31
      %s103 = ssub.s32 %s20, %s27
      %s104 = sor.u32 %s102, %s103
      %p105 = scmp.eq.s32.totalorder %s104, 0
      %s107 = sadd.s32 %s106, 1
      %s108 = scalar_select %p105, %s106, %s107
      %p111 = pneg %p105
      %p112 = scmp.eq.s32.totalorder %s12, 5
      %p113 = por %p111, %p112
      %p114 = scmp.ne.s32.totalorder %s106, %s109
      %p115 = scmp.eq.s32.totalorder %s12, 0
      %p116 = por %p114, %p115
      %p117 = scmp.ne.s32.totalorder %s106, %s109
      %p118 = scmp.eq.s32.totalorder %s17, 5
      %p119 = por %p117, %p118
      %p120 = scmp.ne.s32.totalorder %s109, %s110
      %p121 = scmp.eq.s32.totalorder %s17, 0
      %p122 = por %p120, %p121
      %p123 = scmp.ne.s32.totalorder %s109, %s110
      %p124 = scmp.eq.s32.totalorder %s18, 5
      %p125 = por %p123, %p124
      %p127 = scmp.ne.s32.totalorder %s110, %s126
      %p128 = scmp.eq.s32.totalorder %s18, 0
      %p129 = por %p127, %p128
      %s130 = ssub.s32 %s19, %s31
      %s131 = ssub.s32 %s20, %s27
      %s132 = sor.u32 %s130, %s131
      %p133 = scmp.eq.s32.totalorder %s132, 0
      %s135 = sadd.s32 %s134, 1
      %s136 = scalar_select %p133, %s134, %s135
      %p139 = pneg %p133
      %p140 = scmp.eq.s32.totalorder %s12, 5
      %p141 = por %p139, %p140
      %p142 = scmp.ne.s32.totalorder %s134, %s137
      %p143 = scmp.eq.s32.totalorder %s12, 0
      %p144 = por %p142, %p143
      %p145 = scmp.ne.s32.totalorder %s134, %s137
      %p146 = scmp.eq.s32.totalorder %s17, 5
      %p147 = por %p145, %p146
      %p148 = scmp.ne.s32.totalorder %s137, %s138
      %p149 = scmp.eq.s32.totalorder %s17, 0
      %p150 = por %p148, %p149
      %p151 = scmp.ne.s32.totalorder %s137, %s138
      %p152 = scmp.eq.s32.totalorder %s18, 5
      %p153 = por %p151, %p152
      %p155 = scmp.ne.s32.totalorder %s138, %s154
      %p156 = scmp.eq.s32.totalorder %s18, 0
      %p157 = por %p155, %p156
      %s158 = ssub.s32 %s19, %s31
      %s159 = ssub.s32 %s20, %s27
      %s160 = sor.u32 %s158, %s159
      %p161 = scmp.eq.s32.totalorder %s160, 0
      %s163 = sadd.s32 %s162, 1
      %s164 = scalar_select %p161, %s162, %s163
      %p167 = pneg %p161
      %p168 = scmp.eq.s32.totalorder %s12, 5
      %p169 = por %p167, %p168
      %p170 = scmp.ne.s32.totalorder %s162, %s165
      %p171 = scmp.eq.s32.totalorder %s12, 0
      %p172 = por %p170, %p171
      %p173 = scmp.ne.s32.totalorder %s162, %s165
      %p174 = scmp.eq.s32.totalorder %s17, 5
      %p175 = por %p173, %p174
      %p176 = scmp.ne.s32.totalorder %s165, %s166
      %p177 = scmp.eq.s32.totalorder %s17, 0
      %p178 = por %p176, %p177
      %p179 = scmp.ne.s32.totalorder %s165, %s166
      %p180 = scmp.eq.s32.totalorder %s18, 5
      %p181 = por %p179, %p180
      %p183 = scmp.ne.s32.totalorder %s166, %s182
      %p184 = scmp.eq.s32.totalorder %s18, 0
      %p185 = por %p183, %p184
      %p186 = scmp.le.s32.totalorder 1, %s12
      %p187 = scmp.lt.s32.totalorder %s12, 7
      %p188 = pnand %p186, %p187
      %p189 = pneg %p188
      // Predicated region
      $region9: #{resnet_block_forward.4} parent=5 // pred_check
        _
      $region10: #{resnet_block_forward.4} parent=5 // pred_check_branch
        %191 = sbr.rel (%p188) target = $region12
      $region11: #{resnet_block_forward.4} parent=5 // pred_region
        %s192 = ssub.s32 %s12, 1
        // Predicated region
        $region13: #{resnet_block_forward.4} parent=11 // pred_check
          %p193 = pneg %p73
        $region14: #{resnet_block_forward.4} parent=11 // pred_check_branch
          %195 = sbr.rel (%p193) target = $region16
        $region15: #{resnet_block_forward.4} parent=11 // pred_region
          _
        $region16: #{resnet_block_forward.4} parent=11 // pred_fallthru
          _
        // Predicated region
        $region17: #{resnet_block_forward.4} parent=11 // pred_check
          %p196 = pneg %p94
        $region18: #{resnet_block_forward.4} parent=11 // pred_check_branch
          %198 = sbr.rel (%p196) target = $region20
        $region19: #{resnet_block_forward.4} parent=11 // pred_region
          _
        $region20: #{resnet_block_forward.4} parent=11 // pred_fallthru
          _
      $region12: #{resnet_block_forward.4} parent=5 // pred_fallthru
        _
      %p199 = scmp.lt.s32.totalorder %s12, 6
      // Predicated region
      $region21: #{resnet_block_forward.4} parent=5 // pred_check
        %p200 = pneg %p199
      $region22: #{resnet_block_forward.4} parent=5 // pred_check_branch
        %202 = sbr.rel (%p200) target = $region24
      $region23: #{resnet_block_forward.4} parent=5 // pred_region
        // Predicated region
        $region25: #{resnet_block_forward.4} parent=23 // pred_check
          %p203 = pneg %p46
        $region26: #{resnet_block_forward.4} parent=23 // pred_check_branch
          %205 = sbr.rel (%p203) target = $region28
        $region27: #{resnet_block_forward.4} parent=23 // pred_region
          %s206 = sand.u32 %s36, 1
          %s207 = sand.u32 %s36, 1
          %s208 = smul.addr %s207, 64
          %s209 = scalar_lea.vmem [#allocation2], %s208
          %s210 = smul.u32 2, %s20
          %s211 = smul.addr %s19, 24
          %s212 = sadd.s32 %s210, %s211
          %s213 = smul.addr %s212, 8
          %s214 = scalar_lea.vmem %s0, %s213
          // Predicated region
          $region29: #{resnet_block_forward.4} parent=27 // pred_check
            _
          $region30: #{resnet_block_forward.4} parent=27 // pred_check_branch
            %216 = sbr.rel (0) target = $region32
          $region31: #{resnet_block_forward.4} parent=27 // pred_region
            // Predicated region
            $region33: #{resnet_block_forward.4} parent=31 // pred_check
              _
            $region34: #{resnet_block_forward.4} parent=31 // pred_check_branch
              %218 = sbr.rel (0) target = $region36
            $region35: #{resnet_block_forward.4} parent=31 // pred_region
              loop: start=0, step=1, limit=1
              $region37: #{resnet_block_forward.4} parent=35 // loop_pre_header
                _
              $region38: #{resnet_block_forward.4} parent=35 // loop_header
                %s220 = sphi 0, %s224
                %p221 = scmp.ge.s32.totalorder %s220, 1
                %s225 = sphi %s214, %s214
                %s226 = sphi %s209, %s209
              $region39: #{resnet_block_forward.4} parent=35 // loop_header_branch
                %223 = sbr.rel (%p221) target = $region43
              $region40: #{resnet_block_forward.4} parent=35 // loop_body
                %v227 = vld [vmem:[%s225] sm:$0xff]
                %228 = vst [vmem:[%s226] sm:$0xff] %v227
                %v229 = vld [vmem:[%s225 + $0x8] sm:$0xff]
                %230 = vst [vmem:[%s226 + $0x8] sm:$0xff] %v229
                %v231 = vld [vmem:[%s225 + $0x30] sm:$0xff]
                %232 = vst [vmem:[%s226 + $0x10] sm:$0xff] %v231
                %v233 = vld [vmem:[%s225 + $0x38] sm:$0xff]
                %234 = vst [vmem:[%s226 + $0x18] sm:$0xff] %v233
                %v235 = vld [vmem:[%s225 + $0x60] sm:$0xff]
                %236 = vst [vmem:[%s226 + $0x20] sm:$0xff] %v235
                %v237 = vld [vmem:[%s225 + $0x68] sm:$0xff]
                %238 = vst [vmem:[%s226 + $0x28] sm:$0xff] %v237
                %v239 = vld [vmem:[%s225 + $0x90] sm:$0xff]
                %240 = vst [vmem:[%s226 + $0x30] sm:$0xff] %v239
                %v241 = vld [vmem:[%s225 + $0x98] sm:$0xff]
                %242 = vst [vmem:[%s226 + $0x38] sm:$0xff] %v241
              $region41: #{resnet_block_forward.4} parent=35 // loop_footer
                %s224 = sadd.s32 1, %s220
              $region42: #{resnet_block_forward.4} parent=35 // loop_footer_branch
                %219 = sbr.rel target = $region38
              $region43: #{resnet_block_forward.4} parent=35 // loop_exit
                _
            $region36: #{resnet_block_forward.4} parent=31 // pred_fallthru
              _
            // Predicated region
            $region44: #{resnet_block_forward.4} parent=31 // pred_check
              _
            $region45: #{resnet_block_forward.4} parent=31 // pred_check_branch
              %244 = sbr.rel target = $region47
            $region46: #{resnet_block_forward.4} parent=31 // pred_region
              _
            $region47: #{resnet_block_forward.4} parent=31 // pred_fallthru
              _
          $region32: #{resnet_block_forward.4} parent=27 // pred_fallthru
            _
          %245 = vnop
        $region28: #{resnet_block_forward.4} parent=23 // pred_fallthru
          _
      $region24: #{resnet_block_forward.4} parent=5 // pred_fallthru
        _
      %p246 = scmp.le.s32.totalorder 1, %s12
      %p247 = scmp.lt.s32.totalorder %s12, 7
      %p248 = pnand %p246, %p247
      %p249 = pneg %p248
      // Predicated region
      $region48: #{resnet_block_forward.4} parent=5 // pred_check
        _
      $region49: #{resnet_block_forward.4} parent=5 // pred_check_branch
        %251 = sbr.rel (%p248) target = $region51
      $region50: #{resnet_block_forward.4} parent=5 // pred_region
        %s252 = ssub.s32 %s12, 1
        %s253 = sand.u32 %s39, 1
        %s254 = sand.u32 %s39, 1
        %s255 = smul.addr %s254, 64
        %s256 = scalar_lea.vmem [#allocation2], %s255
        // Predicated region
        $region52: #{resnet_block_forward.4} parent=50 // pred_check
          %p257 = pneg %p52
        $region53: #{resnet_block_forward.4} parent=50 // pred_check_branch
          %259 = sbr.rel (%p257) target = $region55
        $region54: #{resnet_block_forward.4} parent=50 // pred_region
          _
        $region55: #{resnet_block_forward.4} parent=50 // pred_fallthru
          _
        %s260 = sand.u32 %s39, 1
        %s261 = sand.u32 %s39, 1
        %s262 = smul.addr %s261, 64
        %s263 = scalar_lea.vmem [#allocation2], %s262
        %p264 = pneg %p52
        %p265 = pneg %p49
        %p266 = pneg %p73
        %p267 = pneg %p70
        %p268 = pneg %p94
        %p269 = pneg %p91
        %p270 = pneg %p122
        %p271 = pneg %p119
        %s272 = sand.u32 %s109, 1
        %s273 = sand.u32 %s109, 1
        %s274 = smul.addr %s273, 32
        %s275 = scalar_lea.vmem [#allocation3], %s274
        %p276 = pneg %p150
        %p277 = pneg %p147
        %p278 = scmp.lt.s32.totalorder %s21, 1
        %s279 = scalar_select %p278, %s21, 1
        %p280 = scmp.lt.s32.totalorder %s22, 2
        %s281 = scalar_select %p280, %s22, 2
        %s282 = smul.addr %s281, 4
        %s283 = smul.addr %s279, 12
        %s284 = sadd.s32 %s282, %s283
        %s285 = smul.addr %s284, 8
        %s286 = scalar_lea.vmem %s4, %s285
        %p287 = pneg %p178
        %p288 = pneg %p175
        %p289 = scmp.lt.s32.totalorder %s21, 1
        %s290 = scalar_select %p289, %s21, 1
        %p291 = scmp.lt.s32.totalorder %s22, 2
        %s292 = scalar_select %p291, %s22, 2
        %s293 = smul.addr %s292, 4
        %s294 = smul.addr %s290, 12
        %s295 = sadd.s32 %s293, %s294
        %s296 = smul.addr %s295, 8
        %s297 = scalar_lea.vmem %s5, %s296
        %s298 = smul.u32 2, %s22
        %s299 = smul.u32 2, %s22
        %p300 = scmp.lt.s32.totalorder %s21, 1
        %s301 = scalar_select %p300, %s21, 1
        %p302 = scmp.lt.s32.totalorder %s22, 2
        %s303 = scalar_select %p302, %s22, 2
        %s304 = smul.addr %s303, 4
        %s305 = smul.addr %s301, 12
        %s306 = sadd.s32 %s304, %s305
        %s307 = smul.addr %s306, 8
        %s308 = scalar_lea.vmem %s4, %s307
        %p309 = scmp.lt.s32.totalorder %s21, 1
        %s310 = scalar_select %p309, %s21, 1
        %p311 = scmp.lt.s32.totalorder %s22, 2
        %s312 = scalar_select %p311, %s22, 2
        %s313 = smul.addr %s312, 4
        %s314 = smul.addr %s310, 12
        %s315 = sadd.s32 %s313, %s314
        %s316 = smul.addr %s315, 8
        %s317 = scalar_lea.vmem %s5, %s316
        %v318 = vld [vmem:[%s2] sm:$0xff]
        %v319 = vld [vmem:[%s2 + $0x8] sm:$0xff]
        %v320 = vld [vmem:[%s2 + $0x10] sm:$0xff]
        %v321 = vld [vmem:[%s2 + $0x18] sm:$0xff]
        %v322 = vld [vmem:[%s256] sm:$0xff]
        %v323 = vld [vmem:[%s256 + $0x8] sm:$0xff]
        %v324 = vld [vmem:[%s256 + $0x10] sm:$0xff]
        %v325 = vld [vmem:[%s256 + $0x18] sm:$0xff]
        %v326 = vld [vmem:[%s256 + $0x20] sm:$0xff]
        %v327 = vld [vmem:[%s256 + $0x28] sm:$0xff]
        %v328 = vld [vmem:[%s256 + $0x30] sm:$0xff]
        %v329 = vld [vmem:[%s256 + $0x38] sm:$0xff]
        %331 = vset.pattern.permute.xlu0 0
        %332 = vperm.xlu0 %331, %v318
        %v333 = vpop.permute.xlu0 %332
        %336 = vset.pattern.permute.xlu0 0
        %337 = vperm.xlu0 %336, %v319
        %v338 = vpop.permute.xlu0 %337
        %341 = vset.pattern.permute.xlu0 0
        %342 = vperm.xlu0 %341, %v320
        %v343 = vpop.permute.xlu0 %342
        %346 = vset.pattern.permute.xlu0 0
        %347 = vperm.xlu0 %346, %v321
        %v348 = vpop.permute.xlu0 %347
        %v350 = vmul.f32 %v333, %v322
        %v351 = vmul.f32 %v333, %v323
        %v352 = vmul.f32 %v338, %v324
        %v353 = vmul.f32 %v338, %v325
        %v354 = vmul.f32 %v343, %v326
        %v355 = vmul.f32 %v343, %v327
        %v356 = vmul.f32 %v348, %v328
        %v357 = vmul.f32 %v348, %v329
        %358 = vset.pattern.permute.xlu0 1
        %359 = vperm.xlu0 %358, %v318
        %v360 = vpop.permute.xlu0 %359
        %362 = vset.pattern.permute.xlu0 1
        %363 = vperm.xlu0 %362, %v319
        %v364 = vpop.permute.xlu0 %363
        %366 = vset.pattern.permute.xlu0 1
        %367 = vperm.xlu0 %366, %v320
        %v368 = vpop.permute.xlu0 %367
        %370 = vset.pattern.permute.xlu0 1
        %371 = vperm.xlu0 %370, %v321
        %v372 = vpop.permute.xlu0 %371
        %v374 = vadd.f32 %v350, %v360
        %v375 = vadd.f32 %v351, %v360
        %v376 = vadd.f32 %v352, %v364
        %v377 = vadd.f32 %v353, %v364
        %v378 = vadd.f32 %v354, %v368
        %v379 = vadd.f32 %v355, %v368
        %v380 = vadd.f32 %v356, %v372
        %v381 = vadd.f32 %v357, %v372
        %v382 = vmax.f32 %v374, 0.0
        %v383 = vmax.f32 %v375, 0.0
        %v384 = vmax.f32 %v376, 0.0
        %v385 = vmax.f32 %v377, 0.0
        %v386 = vmax.f32 %v378, 0.0
        %v387 = vmax.f32 %v379, 0.0
        %v388 = vmax.f32 %v380, 0.0
        %v389 = vmax.f32 %v381, 0.0
        %v390 = vld [vmem:[%s1] sm:$0xff]
        %v391 = vld [vmem:[%s1 + $0x8] sm:$0xff]
        %v392 = vld [vmem:[%s1 + $0x10] sm:$0xff]
        %v393 = vld [vmem:[%s1 + $0x18] sm:$0xff]
        %394 = vset.pattern.permute.xlu0 2
        %395 = vperm.xlu0 %394, %v318
        %v396 = vpop.permute.xlu0 %395
        %398 = vset.pattern.permute.xlu0 2
        %399 = vperm.xlu0 %398, %v319
        %v400 = vpop.permute.xlu0 %399
        %402 = vset.pattern.permute.xlu0 2
        %403 = vperm.xlu0 %402, %v320
        %v404 = vpop.permute.xlu0 %403
        %406 = vset.pattern.permute.xlu0 2
        %407 = vperm.xlu0 %406, %v321
        %v408 = vpop.permute.xlu0 %407
        %vm410 = vcmask 261120
        %v412 = vsel %vm410, %v390, 0
        %v415 = vsel %vm410, %v391, 0
        %v418 = vsel %vm410, %v392, 0
        %v421 = vsel %vm410, %v393, 0
        %423 = vmatpush.msra.mxu0 0.0
        %424 = vmatpush.msra.mxu0 0.0
        %425 = vmatpush.msra.mxu0 0.0
        %426 = vmatpush.msra.mxu0 0.0
        %427 = vmatpush.msra.mxu0 0.0
        %428 = vmatpush.msra.mxu0 0.0
        %429 = vmatpush.msra.mxu0 0.0
        %430 = vmatpush.msra.mxu0 0.0
        %431 = vmatpush.msra.mxu0 0.0
        %432 = vmatpush.msra.mxu0 0.0
        %433 = vmatpush.msra.mxu0 0.0
        %434 = vmatpush.msra.mxu0 0.0
        %435 = vmatpush.msra.mxu0 %v388
        %436 = vmatpush.msra.mxu0 %v386
        %437 = vmatpush.msra.mxu0 %v384
        %438 = vmatpush.msra.mxu0 %v382
        %439 = vmatmul.f32.gmra.mxu0 %v412
        %v440 = vpop.f32.mrf.mxu0
        %v441 = vadd.f32 %v396, %v440
        %442 = vmatmul.f32.gmra.mxu0 %v415
        %v443 = vpop.f32.mrf.mxu0
        %v444 = vadd.f32 %v400, %v443
        %445 = vmatmul.f32.gmra.mxu0 %v418
        %v446 = vpop.f32.mrf.mxu0
        %v447 = vadd.f32 %v404, %v446
        %448 = vmatmul.f32.gmra.mxu0 %v421
        %v449 = vpop.f32.mrf.mxu0
        %v450 = vadd.f32 %v408, %v449
        %451 = vdwg.mxu0
        %452 = vmatpush.msra.mxu0 0.0
        %453 = vmatpush.msra.mxu0 0.0
        %454 = vmatpush.msra.mxu0 0.0
        %455 = vmatpush.msra.mxu0 0.0
        %456 = vmatpush.msra.mxu0 0.0
        %457 = vmatpush.msra.mxu0 0.0
        %458 = vmatpush.msra.mxu0 0.0
        %459 = vmatpush.msra.mxu0 0.0
        %460 = vmatpush.msra.mxu0 0.0
        %461 = vmatpush.msra.mxu0 0.0
        %462 = vmatpush.msra.mxu0 0.0
        %463 = vmatpush.msra.mxu0 0.0
        %464 = vmatpush.msra.mxu0 %v389
        %465 = vmatpush.msra.mxu0 %v387
        %466 = vmatpush.msra.mxu0 %v385
        %467 = vmatpush.msra.mxu0 %v383
        %468 = vmatmul.f32.gmra.mxu0 %v412
        %v469 = vpop.f32.mrf.mxu0
        %v470 = vadd.f32 %v396, %v469
        %471 = vmatmul.f32.gmra.mxu0 %v415
        %v472 = vpop.f32.mrf.mxu0
        %v473 = vadd.f32 %v400, %v472
        %474 = vmatmul.f32.gmra.mxu0 %v418
        %v475 = vpop.f32.mrf.mxu0
        %v476 = vadd.f32 %v404, %v475
        %477 = vmatmul.f32.gmra.mxu0 %v421
        %v478 = vpop.f32.mrf.mxu0
        %v479 = vadd.f32 %v408, %v478
        %480 = vdwg.mxu0
        %v481 = vpack.c.bf16 %v470, %v441
        %v482 = vpack.c.bf16 %v473, %v444
        %v483 = vpack.c.bf16 %v476, %v447
        %v484 = vpack.c.bf16 %v479, %v450
        %485 = vst [vmem:[%s275] sm:$0xff] %v481
        %486 = vst [vmem:[%s275 + $0x8] sm:$0xff] %v482
        %487 = vst [vmem:[%s275 + $0x10] sm:$0xff] %v483
        %488 = vst [vmem:[%s275 + $0x18] sm:$0xff] %v484
        %s489 = smul.u32 %s22, 256
        %v490 = vlaneseq
        %v491 = vand.u32 %v490, 127
        %v492 = vadd.s32 %v491, 128
        %v493 = vstv %s489
        %v494 = vadd.s32 %v493, %v491
        %v495 = vadd.s32 %v493, %v492
        %vm496 = vcmp.lt.s32.totalorder %v494, 600
        %vm497 = vcmp.lt.s32.totalorder %v495, 600
        %v498 = vsel %vm496, %v441, 0.0
        %v499 = vsel %vm497, %v470, 0.0
        %v500 = vsel %vm496, %v444, 0.0
        %v501 = vsel %vm497, %v473, 0.0
        %v502 = vsel %vm496, %v447, 0.0
        %v503 = vsel %vm497, %v476, 0.0
        %v504 = vsel %vm496, %v450, 0.0
        %v505 = vsel %vm497, %v479, 0.0
        %v506 = vadd.f32 %v498, %v499
        %507 = vadd.xlane.f32.xlu0 %v506
        %v508 = vpop.xlane.xlu0 %507
        %v509 = vadd.f32 %v500, %v501
        %510 = vadd.xlane.f32.xlu0 %v509
        %v511 = vpop.xlane.xlu0 %510
        %v512 = vadd.f32 %v502, %v503
        %513 = vadd.xlane.f32.xlu0 %v512
        %v514 = vpop.xlane.xlu0 %513
        %v515 = vadd.f32 %v504, %v505
        %516 = vadd.xlane.f32.xlu0 %v515
        %v517 = vpop.xlane.xlu0 %516
        %vm518 = vcmask 7168
        %519 = vst.msk [vmem:[%s308] sm:$0xff] %vm518, %v508
        %520 = vst.msk [vmem:[%s308 + $0x8] sm:$0xff] %vm518, %v511
        %521 = vst.msk [vmem:[%s308 + $0x10] sm:$0xff] %vm518, %v514
        %522 = vst.msk [vmem:[%s308 + $0x18] sm:$0xff] %vm518, %v517
        %v523 = vmul.f32 %v498, %v498
        %v524 = vmul.f32 %v499, %v499
        %v525 = vmul.f32 %v500, %v500
        %v526 = vmul.f32 %v501, %v501
        %v527 = vmul.f32 %v502, %v502
        %v528 = vmul.f32 %v503, %v503
        %v529 = vmul.f32 %v504, %v504
        %v530 = vmul.f32 %v505, %v505
        %v531 = vadd.f32 %v523, %v524
        %532 = vadd.xlane.f32.xlu0 %v531
        %v533 = vpop.xlane.xlu0 %532
        %v534 = vadd.f32 %v525, %v526
        %535 = vadd.xlane.f32.xlu0 %v534
        %v536 = vpop.xlane.xlu0 %535
        %v537 = vadd.f32 %v527, %v528
        %538 = vadd.xlane.f32.xlu0 %v537
        %v539 = vpop.xlane.xlu0 %538
        %v540 = vadd.f32 %v529, %v530
        %541 = vadd.xlane.f32.xlu0 %v540
        %v542 = vpop.xlane.xlu0 %541
        %543 = vst.msk [vmem:[%s317] sm:$0xff] %vm518, %v533
        %544 = vst.msk [vmem:[%s317 + $0x8] sm:$0xff] %vm518, %v536
        %545 = vst.msk [vmem:[%s317 + $0x10] sm:$0xff] %vm518, %v539
        %546 = vst.msk [vmem:[%s317 + $0x18] sm:$0xff] %vm518, %v542
        %s547 = sand.u32 %s109, 1
        %s548 = sand.u32 %s109, 1
        %s549 = smul.addr %s548, 32
        %s550 = scalar_lea.vmem [#allocation3], %s549
        %p551 = scmp.lt.s32.totalorder %s21, 1
        %s552 = scalar_select %p551, %s21, 1
        %p553 = scmp.lt.s32.totalorder %s22, 2
        %s554 = scalar_select %p553, %s22, 2
        %s555 = smul.addr %s554, 4
        %s556 = smul.addr %s552, 12
        %s557 = sadd.s32 %s555, %s556
        %s558 = smul.addr %s557, 8
        %s559 = scalar_lea.vmem %s4, %s558
        %p560 = scmp.lt.s32.totalorder %s21, 1
        %s561 = scalar_select %p560, %s21, 1
        %p562 = scmp.lt.s32.totalorder %s22, 2
        %s563 = scalar_select %p562, %s22, 2
        %s564 = smul.addr %s563, 4
        %s565 = smul.addr %s561, 12
        %s566 = sadd.s32 %s564, %s565
        %s567 = smul.addr %s566, 8
        %s568 = scalar_lea.vmem %s5, %s567
        // Predicated region
        $region56: #{resnet_block_forward.4} parent=50 // pred_check
          %p569 = pneg %p119
        $region57: #{resnet_block_forward.4} parent=50 // pred_check_branch
          %571 = sbr.rel (%p569) target = $region59
        $region58: #{resnet_block_forward.4} parent=50 // pred_region
          %s572 = smul.u32 2, %s22
          %s573 = smul.addr %s21, 24
          %s574 = sadd.s32 %s572, %s573
          %s575 = smul.addr %s574, 4
          %s576 = scalar_lea.vmem %s3, %s575
          // Predicated region
          $region60: #{resnet_block_forward.4} parent=58 // pred_check
            _
          $region61: #{resnet_block_forward.4} parent=58 // pred_check_branch
            %578 = sbr.rel (0) target = $region63
          $region62: #{resnet_block_forward.4} parent=58 // pred_region
            // Predicated region
            $region64: #{resnet_block_forward.4} parent=62 // pred_check
              _
            $region65: #{resnet_block_forward.4} parent=62 // pred_check_branch
              %580 = sbr.rel (0) target = $region67
            $region66: #{resnet_block_forward.4} parent=62 // pred_region
              // Predicated region
              $region79: #{resnet_block_forward.4} parent=66 // pred_check
                _
              $region80: #{resnet_block_forward.4} parent=66 // pred_check_branch
                %602 = sbr.rel (0) target = $region82
              $region81: #{resnet_block_forward.4} parent=66 // pred_region
                loop: start=0, step=1, limit=1
                $region83: #{resnet_block_forward.4} parent=81 // loop_pre_header
                  _
                $region84: #{resnet_block_forward.4} parent=81 // loop_header
                  %s604 = sphi 0, %s608
                  %p605 = scmp.ge.s32.totalorder %s604, 1
                  %s609 = sphi %s550, %s550
                  %s610 = sphi %s576, %s576
                $region85: #{resnet_block_forward.4} parent=81 // loop_header_branch
                  %607 = sbr.rel (%p605) target = $region89
                $region86: #{resnet_block_forward.4} parent=81 // loop_body
                  %v611 = vld [vmem:[%s609] sm:$0xff]
                  %612 = vst [vmem:[%s610] sm:$0xff] %v611
                  %v613 = vld [vmem:[%s609 + $0x8] sm:$0xff]
                  %614 = vst [vmem:[%s610 + $0x18] sm:$0xff] %v613
                  %v615 = vld [vmem:[%s609 + $0x10] sm:$0xff]
                  %616 = vst [vmem:[%s610 + $0x30] sm:$0xff] %v615
                  %v617 = vld [vmem:[%s609 + $0x18] sm:$0xff]
                  %618 = vst [vmem:[%s610 + $0x48] sm:$0xff] %v617
                $region87: #{resnet_block_forward.4} parent=81 // loop_footer
                  %s608 = sadd.s32 1, %s604
                $region88: #{resnet_block_forward.4} parent=81 // loop_footer_branch
                  %603 = sbr.rel target = $region84
                $region89: #{resnet_block_forward.4} parent=81 // loop_exit
                  _
              $region82: #{resnet_block_forward.4} parent=66 // pred_fallthru
                _
              // Predicated region
              $region90: #{resnet_block_forward.4} parent=66 // pred_check
                _
              $region91: #{resnet_block_forward.4} parent=66 // pred_check_branch
                %620 = sbr.rel target = $region93
              $region92: #{resnet_block_forward.4} parent=66 // pred_region
                _
              $region93: #{resnet_block_forward.4} parent=66 // pred_fallthru
                _
            $region67: #{resnet_block_forward.4} parent=62 // pred_fallthru
              _
            // Predicated region
            $region68: #{resnet_block_forward.4} parent=62 // pred_check
              _
            $region69: #{resnet_block_forward.4} parent=62 // pred_check_branch
              %582 = sbr.rel target = $region71
            $region70: #{resnet_block_forward.4} parent=62 // pred_region
              %s584 = ssub.s32 256, 1
              loop: start=0, step=1, limit=1
              $region72: #{resnet_block_forward.4} parent=70 // loop_pre_header
                _
              $region73: #{resnet_block_forward.4} parent=70 // loop_header
                %s586 = sphi 0, %s590
                %p587 = scmp.ge.s32.totalorder %s586, 1
                %s591 = sphi %s550, %s550
                %s592 = sphi %s576, %s576
              $region74: #{resnet_block_forward.4} parent=70 // loop_header_branch
                %589 = sbr.rel (%p587) target = $region78
              $region75: #{resnet_block_forward.4} parent=70 // loop_body
                %v593 = vld [vmem:[%s591] sm:%s584]
                %594 = vst [vmem:[%s592] sm:%s584] %v593
                %v595 = vld [vmem:[%s591 + $0x8] sm:%s584]
                %596 = vst [vmem:[%s592 + $0x18] sm:%s584] %v595
                %v597 = vld [vmem:[%s591 + $0x10] sm:%s584]
                %598 = vst [vmem:[%s592 + $0x30] sm:%s584] %v597
                %v599 = vld [vmem:[%s591 + $0x18] sm:%s584]
                %600 = vst [vmem:[%s592 + $0x48] sm:%s584] %v599
              $region76: #{resnet_block_forward.4} parent=70 // loop_footer
                %s590 = sadd.s32 1, %s586
              $region77: #{resnet_block_forward.4} parent=70 // loop_footer_branch
                %585 = sbr.rel target = $region73
              $region78: #{resnet_block_forward.4} parent=70 // loop_exit
                _
            $region71: #{resnet_block_forward.4} parent=62 // pred_fallthru
              _
          $region63: #{resnet_block_forward.4} parent=58 // pred_fallthru
            _
          %621 = vnop
        $region59: #{resnet_block_forward.4} parent=50 // pred_fallthru
          _
        // Predicated region
        $region94: #{resnet_block_forward.4} parent=50 // pred_check
          %p622 = pneg %p147
        $region95: #{resnet_block_forward.4} parent=50 // pred_check_branch
          %624 = sbr.rel (%p622) target = $region97
        $region96: #{resnet_block_forward.4} parent=50 // pred_region
          _
        $region97: #{resnet_block_forward.4} parent=50 // pred_fallthru
          _
        // Predicated region
        $region98: #{resnet_block_forward.4} parent=50 // pred_check
          %p625 = pneg %p175
        $region99: #{resnet_block_forward.4} parent=50 // pred_check_branch
          %627 = sbr.rel (%p625) target = $region101
        $region100: #{resnet_block_forward.4} parent=50 // pred_region
          _
        $region101: #{resnet_block_forward.4} parent=50 // pred_fallthru
          _
      $region51: #{resnet_block_forward.4} parent=5 // pred_fallthru
        _
      %p628 = scmp.le.s32.totalorder 2, %s12
      // Predicated region
      $region102: #{resnet_block_forward.4} parent=5 // pred_check
        %p629 = pneg %p628
      $region103: #{resnet_block_forward.4} parent=5 // pred_check_branch
        %631 = sbr.rel (%p629) target = $region105
      $region104: #{resnet_block_forward.4} parent=5 // pred_region
        %s632 = ssub.s32 %s12, 2
        // Predicated region
        $region106: #{resnet_block_forward.4} parent=104 // pred_check
          %p633 = pneg %p125
        $region107: #{resnet_block_forward.4} parent=104 // pred_check_branch
          %635 = sbr.rel (%p633) target = $region109
        $region108: #{resnet_block_forward.4} parent=104 // pred_region
          %s636 = sand.u32 %s110, 1
          %s637 = sand.u32 %s110, 1
          %s638 = smul.addr %s637, 32
          %s639 = scalar_lea.vmem [#allocation3], %s638
        $region109: #{resnet_block_forward.4} parent=104 // pred_fallthru
          _
        // Predicated region
        $region110: #{resnet_block_forward.4} parent=104 // pred_check
          %p640 = pneg %p153
        $region111: #{resnet_block_forward.4} parent=104 // pred_check_branch
          %642 = sbr.rel (%p640) target = $region113
        $region112: #{resnet_block_forward.4} parent=104 // pred_region
          %p643 = scmp.lt.s32.totalorder %s23, 1
          %s644 = scalar_select %p643, %s23, 1
          %p645 = scmp.lt.s32.totalorder %s24, 2
          %s646 = scalar_select %p645, %s24, 2
          %s647 = smul.addr %s646, 4
          %s648 = smul.addr %s644, 12
          %s649 = sadd.s32 %s647, %s648
          %s650 = smul.addr %s649, 8
          %s651 = scalar_lea.vmem %s4, %s650
        $region113: #{resnet_block_forward.4} parent=104 // pred_fallthru
          _
        // Predicated region
        $region114: #{resnet_block_forward.4} parent=104 // pred_check
          %p652 = pneg %p181
        $region115: #{resnet_block_forward.4} parent=104 // pred_check_branch
          %654 = sbr.rel (%p652) target = $region117
        $region116: #{resnet_block_forward.4} parent=104 // pred_region
          %p655 = scmp.lt.s32.totalorder %s23, 1
          %s656 = scalar_select %p655, %s23, 1
          %p657 = scmp.lt.s32.totalorder %s24, 2
          %s658 = scalar_select %p657, %s24, 2
          %s659 = smul.addr %s658, 4
          %s660 = smul.addr %s656, 12
          %s661 = sadd.s32 %s659, %s660
          %s662 = smul.addr %s661, 8
          %s663 = scalar_lea.vmem %s5, %s662
        $region117: #{resnet_block_forward.4} parent=104 // pred_fallthru
          _
      $region105: #{resnet_block_forward.4} parent=5 // pred_fallthru
        _
    $region6: #{resnet_block_forward.4} parent=1 // loop_footer
      %s16 = sadd.s32 1, %s12
    $region7: #{resnet_block_forward.4} parent=1 // loop_footer_branch
      %11 = sbr.rel target = $region3
    $region8: #{resnet_block_forward.4} parent=1 // loop_exit
      _

// kernel: resnet_block_forward.5
$region0: #{resnet_block_forward.5}
  #allocation0 [shape = 'u32[]', space=smem, size = 0x4, offset = 0x4, fixed_abs, tag = 'smem constant byte address 0x4 - core index']
  #allocation1 [shape = 'u32[72,128]{1,0:T(1,128)}', space=vmem, size = 0x9000, scoped, tag = 'internal scratch']
  %s0 = inlined_call_operand.vmem [shape: f32[2,32,768], index: 0, kind: input, shape index: {}]
  %s1 = inlined_call_operand.vmem [shape: bf16[2,32,768], index: 1, kind: input, shape index: {}]
  %s2 = inlined_call_operand.vmem [shape: f32[32,32], index: 2, kind: input, shape index: {}]
  %s3 = inlined_call_operand.vmem [shape: f32[32,8], index: 3, kind: input, shape index: {}]
  %s4 = inlined_call_operand.vmem [shape: f32[2,32,768], index: 4, kind: output, shape index: {}]
  %s5 = sld [smem:[#allocation0]]
  $region129: #{resnet_block_forward.5} parent=0
    _
  %s7 = ssub.s32 1, %s5
  %s8 = scalar_select 0, %s7, %s5
  $region1: #{resnet_block_forward.5} parent=0
    #allocation2 [shape = 'u8[65536]{0}', space=vmem, size = 0x10000, scoped, tag = 'input window, operand 0']
    #allocation3 [shape = 'u8[32768]{0}', space=vmem, size = 0x8000, scoped, tag = 'input window, operand 1']
    #allocation4 [shape = 'u8[65536]{0}', space=vmem, size = 0x10000, scoped, tag = 'output window, operand 0']
    loop: start=0, step=1, limit=8
    $region2: #{resnet_block_forward.5} parent=1 // loop_pre_header
      _
    $region3: #{resnet_block_forward.5} parent=1 // loop_header
      %s10 = sphi 0, %s14
      %p11 = scmp.ge.s32.totalorder %s10, 8
      %s17 = sphi 0, %s29
      %s18 = sphi 0, %s25
      %s19 = sphi 0, %s17
      %s20 = sphi 0, %s18
      %s21 = sphi 0, %s19
      %s22 = sphi 0, %s20
      %s34 = sphi 0, %s36
      %s37 = sphi 0, %s34
      %s38 = sphi 0, %s37
      %s54 = sphi 0, %s38
      %s62 = sphi 0, %s64
      %s65 = sphi 0, %s62
      %s66 = sphi 0, %s65
      %s82 = sphi 0, %s66
      %s86 = sphi 0, %s86
      %s88 = sphi 0, %s86
      %s89 = sphi 0, %s88
      %s103 = sphi 0, %s89
      %s107 = sphi 0, %s107
      %s109 = sphi 0, %s107
      %s110 = sphi 0, %s109
      %s124 = sphi 0, %s110
      %s132 = sphi 0, %s134
      %s135 = sphi 0, %s132
      %s136 = sphi 0, %s135
      %s152 = sphi 0, %s136
    $region4: #{resnet_block_forward.5} parent=1 // loop_header_branch
      %13 = sbr.rel (%p11) target = $region8
    $region5: #{resnet_block_forward.5} parent=1 // loop_body
      %s15 = ssub.s32 %s10, 1
      %s16 = ssub.s32 %s10, 2
      %s23 = sadd.s32 1, %s18
      %p24 = scmp.ge.s32.totalorder %s23, 3
      %s25 = scalar_select %p24, 0, %s23
      %s26 = sadd.s32 1, %s17
      %s27 = scalar_select %p24, %s26, %s17
      %p28 = scmp.ge.s32.totalorder %s27, 2
      %s29 = scalar_select %p28, 0, %s27
      %s30 = ssub.s32 %s17, %s29
      %s31 = ssub.s32 %s18, %s25
      %s32 = sor.u32 %s30, %s31
      %p33 = scmp.eq.s32.totalorder %s32, 0
      %s35 = sadd.s32 %s34, 1
      %s36 = scalar_select %p33, %s34, %s35
      %p39 = pneg %p33
      %p40 = scmp.eq.s32.totalorder %s10, 5
      %p41 = por %p39, %p40
      %p42 = scmp.ne.s32.totalorder %s34, %s37
      %p43 = scmp.eq.s32.totalorder %s10, 0
      %p44 = por %p42, %p43
      %p45 = scmp.ne.s32.totalorder %s34, %s37
      %p46 = scmp.eq.s32.totalorder %s15, 5
      %p47 = por %p45, %p46
      %p48 = scmp.ne.s32.totalorder %s37, %s38
      %p49 = scmp.eq.s32.totalorder %s15, 0
      %p50 = por %p48, %p49
      %p51 = scmp.ne.s32.totalorder %s37, %s38
      %p52 = scmp.eq.s32.totalorder %s16, 5
      %p53 = por %p51, %p52
      %p55 = scmp.ne.s32.totalorder %s38, %s54
      %p56 = scmp.eq.s32.totalorder %s16, 0
      %p57 = por %p55, %p56
      %s58 = ssub.s32 %s17, %s29
      %s59 = ssub.s32 %s18, %s25
      %s60 = sor.u32 %s58, %s59
      %p61 = scmp.eq.s32.totalorder %s60, 0
      %s63 = sadd.s32 %s62, 1
      %s64 = scalar_select %p61, %s62, %s63
      %p67 = pneg %p61
      %p68 = scmp.eq.s32.totalorder %s10, 5
      %p69 = por %p67, %p68
      %p70 = scmp.ne.s32.totalorder %s62, %s65
      %p71 = scmp.eq.s32.totalorder %s10, 0
      %p72 = por %p70, %p71
      %p73 = scmp.ne.s32.totalorder %s62, %s65
      %p74 = scmp.eq.s32.totalorder %s15, 5
      %p75 = por %p73, %p74
      %p76 = scmp.ne.s32.totalorder %s65, %s66
      %p77 = scmp.eq.s32.totalorder %s15, 0
      %p78 = por %p76, %p77
      %p79 = scmp.ne.s32.totalorder %s65, %s66
      %p80 = scmp.eq.s32.totalorder %s16, 5
      %p81 = por %p79, %p80
      %p83 = scmp.ne.s32.totalorder %s66, %s82
      %p84 = scmp.eq.s32.totalorder %s16, 0
      %p85 = por %p83, %p84
      %s87 = sadd.s32 %s86, 1
      %p90 = scmp.eq.s32.totalorder %s10, 5
      %p91 = scmp.ne.s32.totalorder %s86, %s88
      %p92 = scmp.eq.s32.totalorder %s10, 0
      %p93 = por %p91, %p92
      %p94 = scmp.ne.s32.totalorder %s86, %s88
      %p95 = scmp.eq.s32.totalorder %s15, 5
      %p96 = por %p94, %p95
      %p97 = scmp.ne.s32.totalorder %s88, %s89
      %p98 = scmp.eq.s32.totalorder %s15, 0
      %p99 = por %p97, %p98
      %p100 = scmp.ne.s32.totalorder %s88, %s89
      %p101 = scmp.eq.s32.totalorder %s16, 5
      %p102 = por %p100, %p101
      %p104 = scmp.ne.s32.totalorder %s89, %s103
      %p105 = scmp.eq.s32.totalorder %s16, 0
      %p106 = por %p104, %p105
      %s108 = sadd.s32 %s107, 1
      %p111 = scmp.eq.s32.totalorder %s10, 5
      %p112 = scmp.ne.s32.totalorder %s107, %s109
      %p113 = scmp.eq.s32.totalorder %s10, 0
      %p114 = por %p112, %p113
      %p115 = scmp.ne.s32.totalorder %s107, %s109
      %p116 = scmp.eq.s32.totalorder %s15, 5
      %p117 = por %p115, %p116
      %p118 = scmp.ne.s32.totalorder %s109, %s110
      %p119 = scmp.eq.s32.totalorder %s15, 0
      %p120 = por %p118, %p119
      %p121 = scmp.ne.s32.totalorder %s109, %s110
      %p122 = scmp.eq.s32.totalorder %s16, 5
      %p123 = por %p121, %p122
      %p125 = scmp.ne.s32.totalorder %s110, %s124
      %p126 = scmp.eq.s32.totalorder %s16, 0
      %p127 = por %p125, %p126
      %s128 = ssub.s32 %s17, %s29
      %s129 = ssub.s32 %s18, %s25
      %s130 = sor.u32 %s128, %s129
      %p131 = scmp.eq.s32.totalorder %s130, 0
      %s133 = sadd.s32 %s132, 1
      %s134 = scalar_select %p131, %s132, %s133
      %p137 = pneg %p131
      %p138 = scmp.eq.s32.totalorder %s10, 5
      %p139 = por %p137, %p138
      %p140 = scmp.ne.s32.totalorder %s132, %s135
      %p141 = scmp.eq.s32.totalorder %s10, 0
      %p142 = por %p140, %p141
      %p143 = scmp.ne.s32.totalorder %s132, %s135
      %p144 = scmp.eq.s32.totalorder %s15, 5
      %p145 = por %p143, %p144
      %p146 = scmp.ne.s32.totalorder %s135, %s136
      %p147 = scmp.eq.s32.totalorder %s15, 0
      %p148 = por %p146, %p147
      %p149 = scmp.ne.s32.totalorder %s135, %s136
      %p150 = scmp.eq.s32.totalorder %s16, 5
      %p151 = por %p149, %p150
      %p153 = scmp.ne.s32.totalorder %s136, %s152
      %p154 = scmp.eq.s32.totalorder %s16, 0
      %p155 = por %p153, %p154
      %p156 = scmp.le.s32.totalorder 1, %s10
      %p157 = scmp.lt.s32.totalorder %s10, 7
      %p158 = pnand %p156, %p157
      %p159 = pneg %p158
      // Predicated region
      $region9: #{resnet_block_forward.5} parent=5 // pred_check
        _
      $region10: #{resnet_block_forward.5} parent=5 // pred_check_branch
        %161 = sbr.rel (%p158) target = $region12
      $region11: #{resnet_block_forward.5} parent=5 // pred_region
        %s162 = ssub.s32 %s10, 1
        // Predicated region
        $region13: #{resnet_block_forward.5} parent=11 // pred_check
          %p163 = pneg %p99
        $region14: #{resnet_block_forward.5} parent=11 // pred_check_branch
          %165 = sbr.rel (%p163) target = $region16
        $region15: #{resnet_block_forward.5} parent=11 // pred_region
          _
        $region16: #{resnet_block_forward.5} parent=11 // pred_fallthru
          _
        // Predicated region
        $region17: #{resnet_block_forward.5} parent=11 // pred_check
          %p166 = pneg %p120
        $region18: #{resnet_block_forward.5} parent=11 // pred_check_branch
          %168 = sbr.rel (%p166) target = $region20
        $region19: #{resnet_block_forward.5} parent=11 // pred_region
          _
        $region20: #{resnet_block_forward.5} parent=11 // pred_fallthru
          _
      $region12: #{resnet_block_forward.5} parent=5 // pred_fallthru
        _
      %p169 = scmp.lt.s32.totalorder %s10, 6
      // Predicated region
      $region21: #{resnet_block_forward.5} parent=5 // pred_check
        %p170 = pneg %p169
      $region22: #{resnet_block_forward.5} parent=5 // pred_check_branch
        %172 = sbr.rel (%p170) target = $region24
      $region23: #{resnet_block_forward.5} parent=5 // pred_region
        // Predicated region
        $region25: #{resnet_block_forward.5} parent=23 // pred_check
          %p173 = pneg %p44
        $region26: #{resnet_block_forward.5} parent=23 // pred_check_branch
          %175 = sbr.rel (%p173) target = $region28
        $region27: #{resnet_block_forward.5} parent=23 // pred_region
          %s176 = sand.u32 %s34, 1
          %s177 = sand.u32 %s34, 1
          %s178 = smul.addr %s177, 64
          %s179 = scalar_lea.vmem [#allocation2], %s178
          %s180 = smul.u32 2, %s18
          %s181 = smul.addr %s17, 24
          %s182 = sadd.s32 %s180, %s181
          %s183 = smul.addr %s182, 8
          %s184 = scalar_lea.vmem %s0, %s183
          // Predicated region
          $region29: #{resnet_block_forward.5} parent=27 // pred_check
            _
          $region30: #{resnet_block_forward.5} parent=27 // pred_check_branch
            %186 = sbr.rel (0) target = $region32
          $region31: #{resnet_block_forward.5} parent=27 // pred_region
            // Predicated region
            $region33: #{resnet_block_forward.5} parent=31 // pred_check
              _
            $region34: #{resnet_block_forward.5} parent=31 // pred_check_branch
              %188 = sbr.rel (0) target = $region36
            $region35: #{resnet_block_forward.5} parent=31 // pred_region
              loop: start=0, step=1, limit=1
              $region37: #{resnet_block_forward.5} parent=35 // loop_pre_header
                _
              $region38: #{resnet_block_forward.5} parent=35 // loop_header
                %s190 = sphi 0, %s194
                %p191 = scmp.ge.s32.totalorder %s190, 1
                %s195 = sphi %s184, %s184
                %s196 = sphi %s179, %s179
              $region39: #{resnet_block_forward.5} parent=35 // loop_header_branch
                %193 = sbr.rel (%p191) target = $region43
              $region40: #{resnet_block_forward.5} parent=35 // loop_body
                %v197 = vld [vmem:[%s195] sm:$0xff]
                %198 = vst [vmem:[%s196] sm:$0xff] %v197
                %v199 = vld [vmem:[%s195 + $0x8] sm:$0xff]
                %200 = vst [vmem:[%s196 + $0x8] sm:$0xff] %v199
                %v201 = vld [vmem:[%s195 + $0x30] sm:$0xff]
                %202 = vst [vmem:[%s196 + $0x10] sm:$0xff] %v201
                %v203 = vld [vmem:[%s195 + $0x38] sm:$0xff]
                %204 = vst [vmem:[%s196 + $0x18] sm:$0xff] %v203
                %v205 = vld [vmem:[%s195 + $0x60] sm:$0xff]
                %206 = vst [vmem:[%s196 + $0x20] sm:$0xff] %v205
                %v207 = vld [vmem:[%s195 + $0x68] sm:$0xff]
                %208 = vst [vmem:[%s196 + $0x28] sm:$0xff] %v207
                %v209 = vld [vmem:[%s195 + $0x90] sm:$0xff]
                %210 = vst [vmem:[%s196 + $0x30] sm:$0xff] %v209
                %v211 = vld [vmem:[%s195 + $0x98] sm:$0xff]
                %212 = vst [vmem:[%s196 + $0x38] sm:$0xff] %v211
              $region41: #{resnet_block_forward.5} parent=35 // loop_footer
                %s194 = sadd.s32 1, %s190
              $region42: #{resnet_block_forward.5} parent=35 // loop_footer_branch
                %189 = sbr.rel target = $region38
              $region43: #{resnet_block_forward.5} parent=35 // loop_exit
                _
            $region36: #{resnet_block_forward.5} parent=31 // pred_fallthru
              _
            // Predicated region
            $region44: #{resnet_block_forward.5} parent=31 // pred_check
              _
            $region45: #{resnet_block_forward.5} parent=31 // pred_check_branch
              %214 = sbr.rel target = $region47
            $region46: #{resnet_block_forward.5} parent=31 // pred_region
              _
            $region47: #{resnet_block_forward.5} parent=31 // pred_fallthru
              _
          $region32: #{resnet_block_forward.5} parent=27 // pred_fallthru
            _
          %215 = vnop
        $region28: #{resnet_block_forward.5} parent=23 // pred_fallthru
          _
        // Predicated region
        $region48: #{resnet_block_forward.5} parent=23 // pred_check
          %p216 = pneg %p72
        $region49: #{resnet_block_forward.5} parent=23 // pred_check_branch
          %218 = sbr.rel (%p216) target = $region51
        $region50: #{resnet_block_forward.5} parent=23 // pred_region
          %s219 = sand.u32 %s62, 1
          %s220 = sand.u32 %s62, 1
          %s221 = smul.addr %s220, 32
          %s222 = scalar_lea.vmem [#allocation3], %s221
          %s223 = smul.u32 2, %s18
          %s224 = smul.addr %s17, 24
          %s225 = sadd.s32 %s223, %s224
          %s226 = smul.addr %s225, 4
          %s227 = scalar_lea.vmem %s1, %s226
          // Predicated region
          $region52: #{resnet_block_forward.5} parent=50 // pred_check
            _
          $region53: #{resnet_block_forward.5} parent=50 // pred_check_branch
            %229 = sbr.rel (0) target = $region55
          $region54: #{resnet_block_forward.5} parent=50 // pred_region
            // Predicated region
            $region56: #{resnet_block_forward.5} parent=54 // pred_check
              _
            $region57: #{resnet_block_forward.5} parent=54 // pred_check_branch
              %231 = sbr.rel (0) target = $region59
            $region58: #{resnet_block_forward.5} parent=54 // pred_region
              // Predicated region
              $region71: #{resnet_block_forward.5} parent=58 // pred_check
                _
              $region72: #{resnet_block_forward.5} parent=58 // pred_check_branch
                %253 = sbr.rel (0) target = $region74
              $region73: #{resnet_block_forward.5} parent=58 // pred_region
                loop: start=0, step=1, limit=1
                $region75: #{resnet_block_forward.5} parent=73 // loop_pre_header
                  _
                $region76: #{resnet_block_forward.5} parent=73 // loop_header
                  %s255 = sphi 0, %s259
                  %p256 = scmp.ge.s32.totalorder %s255, 1
                  %s260 = sphi %s227, %s227
                  %s261 = sphi %s222, %s222
                $region77: #{resnet_block_forward.5} parent=73 // loop_header_branch
                  %258 = sbr.rel (%p256) target = $region81
                $region78: #{resnet_block_forward.5} parent=73 // loop_body
                  %v262 = vld [vmem:[%s260] sm:$0xff]
                  %263 = vst [vmem:[%s261] sm:$0xff] %v262
                  %v264 = vld [vmem:[%s260 + $0x18] sm:$0xff]
                  %265 = vst [vmem:[%s261 + $0x8] sm:$0xff] %v264
                  %v266 = vld [vmem:[%s260 + $0x30] sm:$0xff]
                  %267 = vst [vmem:[%s261 + $0x10] sm:$0xff] %v266
                  %v268 = vld [vmem:[%s260 + $0x48] sm:$0xff]
                  %269 = vst [vmem:[%s261 + $0x18] sm:$0xff] %v268
                $region79: #{resnet_block_forward.5} parent=73 // loop_footer
                  %s259 = sadd.s32 1, %s255
                $region80: #{resnet_block_forward.5} parent=73 // loop_footer_branch
                  %254 = sbr.rel target = $region76
                $region81: #{resnet_block_forward.5} parent=73 // loop_exit
                  _
              $region74: #{resnet_block_forward.5} parent=58 // pred_fallthru
                _
              // Predicated region
              $region82: #{resnet_block_forward.5} parent=58 // pred_check
                _
              $region83: #{resnet_block_forward.5} parent=58 // pred_check_branch
                %271 = sbr.rel target = $region85
              $region84: #{resnet_block_forward.5} parent=58 // pred_region
                _
              $region85: #{resnet_block_forward.5} parent=58 // pred_fallthru
                _
            $region59: #{resnet_block_forward.5} parent=54 // pred_fallthru
              _
            // Predicated region
            $region60: #{resnet_block_forward.5} parent=54 // pred_check
              _
            $region61: #{resnet_block_forward.5} parent=54 // pred_check_branch
              %233 = sbr.rel target = $region63
            $region62: #{resnet_block_forward.5} parent=54 // pred_region
              %s235 = ssub.s32 256, 1
              loop: start=0, step=1, limit=1
              $region64: #{resnet_block_forward.5} parent=62 // loop_pre_header
                _
              $region65: #{resnet_block_forward.5} parent=62 // loop_header
                %s237 = sphi 0, %s241
                %p238 = scmp.ge.s32.totalorder %s237, 1
                %s242 = sphi %s227, %s227
                %s243 = sphi %s222, %s222
              $region66: #{resnet_block_forward.5} parent=62 // loop_header_branch
                %240 = sbr.rel (%p238) target = $region70
              $region67: #{resnet_block_forward.5} parent=62 // loop_body
                %v244 = vld [vmem:[%s242] sm:%s235]
                %245 = vst [vmem:[%s243] sm:%s235] %v244
                %v246 = vld [vmem:[%s242 + $0x18] sm:%s235]
                %247 = vst [vmem:[%s243 + $0x8] sm:%s235] %v246
                %v248 = vld [vmem:[%s242 + $0x30] sm:%s235]
                %249 = vst [vmem:[%s243 + $0x10] sm:%s235] %v248
                %v250 = vld [vmem:[%s242 + $0x48] sm:%s235]
                %251 = vst [vmem:[%s243 + $0x18] sm:%s235] %v250
              $region68: #{resnet_block_forward.5} parent=62 // loop_footer
                %s241 = sadd.s32 1, %s237
              $region69: #{resnet_block_forward.5} parent=62 // loop_footer_branch
                %236 = sbr.rel target = $region65
              $region70: #{resnet_block_forward.5} parent=62 // loop_exit
                _
            $region63: #{resnet_block_forward.5} parent=54 // pred_fallthru
              _
          $region55: #{resnet_block_forward.5} parent=50 // pred_fallthru
            _
          %272 = vnop
        $region51: #{resnet_block_forward.5} parent=23 // pred_fallthru
          _
      $region24: #{resnet_block_forward.5} parent=5 // pred_fallthru
        _
      %p273 = scmp.le.s32.totalorder 1, %s10
      %p274 = scmp.lt.s32.totalorder %s10, 7
      %p275 = pnand %p273, %p274
      %p276 = pneg %p275
      // Predicated region
      $region86: #{resnet_block_forward.5} parent=5 // pred_check
        _
      $region87: #{resnet_block_forward.5} parent=5 // pred_check_branch
        %278 = sbr.rel (%p275) target = $region89
      $region88: #{resnet_block_forward.5} parent=5 // pred_region
        %s279 = ssub.s32 %s10, 1
        %s280 = sand.u32 %s37, 1
        %s281 = sand.u32 %s37, 1
        %s282 = smul.addr %s281, 64
        %s283 = scalar_lea.vmem [#allocation2], %s282
        // Predicated region
        $region90: #{resnet_block_forward.5} parent=88 // pred_check
          %p284 = pneg %p50
        $region91: #{resnet_block_forward.5} parent=88 // pred_check_branch
          %286 = sbr.rel (%p284) target = $region93
        $region92: #{resnet_block_forward.5} parent=88 // pred_region
          _
        $region93: #{resnet_block_forward.5} parent=88 // pred_fallthru
          _
        %s287 = sand.u32 %s65, 1
        %s288 = sand.u32 %s65, 1
        %s289 = smul.addr %s288, 32
        %s290 = scalar_lea.vmem [#allocation3], %s289
        // Predicated region
        $region94: #{resnet_block_forward.5} parent=88 // pred_check
          %p291 = pneg %p78
        $region95: #{resnet_block_forward.5} parent=88 // pred_check_branch
          %293 = sbr.rel (%p291) target = $region97
        $region96: #{resnet_block_forward.5} parent=88 // pred_region
          _
        $region97: #{resnet_block_forward.5} parent=88 // pred_fallthru
          _
        %s294 = sand.u32 %s37, 1
        %s295 = sand.u32 %s37, 1
        %s296 = smul.addr %s295, 64
        %s297 = scalar_lea.vmem [#allocation2], %s296
        %p298 = pneg %p50
        %p299 = pneg %p47
        %s300 = sand.u32 %s65, 1
        %s301 = sand.u32 %s65, 1
        %s302 = smul.addr %s301, 32
        %s303 = scalar_lea.vmem [#allocation3], %s302
        %p304 = pneg %p78
        %p305 = pneg %p75
        %p306 = pneg %p99
        %p307 = pneg %p96
        %p308 = pneg %p120
        %p309 = pneg %p117
        %p310 = pneg %p148
        %p311 = pneg %p145
        %s312 = sand.u32 %s135, 1
        %s313 = sand.u32 %s135, 1
        %s314 = smul.addr %s313, 64
        %s315 = scalar_lea.vmem [#allocation4], %s314
        %s316 = smul.u32 2, %s20
        %s317 = smul.u32 2, %s20
        %s318 = smul.u32 2, %s20
        %v319 = vld [vmem:[%s3] sm:$0xff]
        %v320 = vld [vmem:[%s3 + $0x8] sm:$0xff]
        %v321 = vld [vmem:[%s3 + $0x10] sm:$0xff]
        %v322 = vld [vmem:[%s3 + $0x18] sm:$0xff]
        %v323 = vld [vmem:[%s290] sm:$0xff]
        %v324 = vld [vmem:[%s290 + $0x8] sm:$0xff]
        %v325 = vld [vmem:[%s290 + $0x10] sm:$0xff]
        %v326 = vld [vmem:[%s290 + $0x18] sm:$0xff]
        %v327 = vunpack.c.l.bf16 %v323
        %v328 = vunpack.c.h.bf16 %v323
        %v329 = vunpack.c.l.bf16 %v324
        %v330 = vunpack.c.h.bf16 %v324
        %v331 = vunpack.c.l.bf16 %v325
        %v332 = vunpack.c.h.bf16 %v325
        %v333 = vunpack.c.l.bf16 %v326
        %v334 = vunpack.c.h.bf16 %v326
        %336 = vset.pattern.permute.xlu0 0
        %337 = vperm.xlu0 %336, %v319
        %v338 = vpop.permute.xlu0 %337
        %341 = vset.pattern.permute.xlu0 0
        %342 = vperm.xlu0 %341, %v320
        %v343 = vpop.permute.xlu0 %342
        %346 = vset.pattern.permute.xlu0 0
        %347 = vperm.xlu0 %346, %v321
        %v348 = vpop.permute.xlu0 %347
        %351 = vset.pattern.permute.xlu0 0
        %352 = vperm.xlu0 %351, %v322
        %v353 = vpop.permute.xlu0 %352
        %v355 = vmul.f32 %v338, %v327
        %v356 = vmul.f32 %v338, %v328
        %v357 = vmul.f32 %v343, %v329
        %v358 = vmul.f32 %v343, %v330
        %v359 = vmul.f32 %v348, %v331
        %v360 = vmul.f32 %v348, %v332
        %v361 = vmul.f32 %v353, %v333
        %v362 = vmul.f32 %v353, %v334
        %363 = vset.pattern.permute.xlu0 1
        %364 = vperm.xlu0 %363, %v319
        %v365 = vpop.permute.xlu0 %364
        %367 = vset.pattern.permute.xlu0 1
        %368 = vperm.xlu0 %367, %v320
        %v369 = vpop.permute.xlu0 %368
        %371 = vset.pattern.permute.xlu0 1
        %372 = vperm.xlu0 %371, %v321
        %v373 = vpop.permute.xlu0 %372
        %375 = vset.pattern.permute.xlu0 1
        %376 = vperm.xlu0 %375, %v322
        %v377 = vpop.permute.xlu0 %376
        %v379 = vadd.f32 %v355, %v365
        %v380 = vadd.f32 %v356, %v365
        %v381 = vadd.f32 %v357, %v369
        %v382 = vadd.f32 %v358, %v369
        %v383 = vadd.f32 %v359, %v373
        %v384 = vadd.f32 %v360, %v373
        %v385 = vadd.f32 %v361, %v377
        %v386 = vadd.f32 %v362, %v377
        %v387 = vmax.f32 %v379, 0.0
        %v388 = vmax.f32 %v380, 0.0
        %v389 = vmax.f32 %v381, 0.0
        %v390 = vmax.f32 %v382, 0.0
        %v391 = vmax.f32 %v383, 0.0
        %v392 = vmax.f32 %v384, 0.0
        %v393 = vmax.f32 %v385, 0.0
        %v394 = vmax.f32 %v386, 0.0
        %v395 = vld [vmem:[%s2] sm:$0xff]
        %v396 = vld [vmem:[%s2 + $0x8] sm:$0xff]
        %v397 = vld [vmem:[%s2 + $0x10] sm:$0xff]
        %v398 = vld [vmem:[%s2 + $0x18] sm:$0xff]
        %399 = vset.pattern.permute.xlu0 2
        %400 = vperm.xlu0 %399, %v319
        %v401 = vpop.permute.xlu0 %400
        %403 = vset.pattern.permute.xlu0 2
        %404 = vperm.xlu0 %403, %v320
        %v405 = vpop.permute.xlu0 %404
        %407 = vset.pattern.permute.xlu0 2
        %408 = vperm.xlu0 %407, %v321
        %v409 = vpop.permute.xlu0 %408
        %411 = vset.pattern.permute.xlu0 2
        %412 = vperm.xlu0 %411, %v322
        %v413 = vpop.permute.xlu0 %412
        %vm415 = vcmask 261120
        %v417 = vsel %vm415, %v395, 0
        %v420 = vsel %vm415, %v396, 0
        %v423 = vsel %vm415, %v397, 0
        %v426 = vsel %vm415, %v398, 0
        %428 = vmatpush.msra.mxu0 0.0
        %429 = vmatpush.msra.mxu0 0.0
        %430 = vmatpush.msra.mxu0 0.0
        %431 = vmatpush.msra.mxu0 0.0
        %432 = vmatpush.msra.mxu0 0.0
        %433 = vmatpush.msra.mxu0 0.0
        %434 = vmatpush.msra.mxu0 0.0
        %435 = vmatpush.msra.mxu0 0.0
        %436 = vmatpush.msra.mxu0 0.0
        %437 = vmatpush.msra.mxu0 0.0
        %438 = vmatpush.msra.mxu0 0.0
        %439 = vmatpush.msra.mxu0 0.0
        %440 = vmatpush.msra.mxu0 %v393
        %441 = vmatpush.msra.mxu0 %v391
        %442 = vmatpush.msra.mxu0 %v389
        %443 = vmatpush.msra.mxu0 %v387
        %444 = vmatmul.f32.gmra.mxu0 %v417
        %v445 = vpop.f32.mrf.mxu0
        %v446 = vadd.f32 %v401, %v445
        %447 = vmatmul.f32.gmra.mxu0 %v420
        %v448 = vpop.f32.mrf.mxu0
        %v449 = vadd.f32 %v405, %v448
        %450 = vmatmul.f32.gmra.mxu0 %v423
        %v451 = vpop.f32.mrf.mxu0
        %v452 = vadd.f32 %v409, %v451
        %453 = vmatmul.f32.gmra.mxu0 %v426
        %v454 = vpop.f32.mrf.mxu0
        %v455 = vadd.f32 %v413, %v454
        %456 = vdwg.mxu0
        %457 = vmatpush.msra.mxu0 0.0
        %458 = vmatpush.msra.mxu0 0.0
        %459 = vmatpush.msra.mxu0 0.0
        %460 = vmatpush.msra.mxu0 0.0
        %461 = vmatpush.msra.mxu0 0.0
        %462 = vmatpush.msra.mxu0 0.0
        %463 = vmatpush.msra.mxu0 0.0
        %464 = vmatpush.msra.mxu0 0.0
        %465 = vmatpush.msra.mxu0 0.0
        %466 = vmatpush.msra.mxu0 0.0
        %467 = vmatpush.msra.mxu0 0.0
        %468 = vmatpush.msra.mxu0 0.0
        %469 = vmatpush.msra.mxu0 %v394
        %470 = vmatpush.msra.mxu0 %v392
        %471 = vmatpush.msra.mxu0 %v390
        %472 = vmatpush.msra.mxu0 %v388
        %473 = vmatmul.f32.gmra.mxu0 %v417
        %v474 = vpop.f32.mrf.mxu0
        %v475 = vadd.f32 %v401, %v474
        %476 = vmatmul.f32.gmra.mxu0 %v420
        %v477 = vpop.f32.mrf.mxu0
        %v478 = vadd.f32 %v405, %v477
        %479 = vmatmul.f32.gmra.mxu0 %v423
        %v480 = vpop.f32.mrf.mxu0
        %v481 = vadd.f32 %v409, %v480
        %482 = vmatmul.f32.gmra.mxu0 %v426
        %v483 = vpop.f32.mrf.mxu0
        %v484 = vadd.f32 %v413, %v483
        %485 = vdwg.mxu0
        %v486 = vld [vmem:[%s283] sm:$0xff]
        %v487 = vld [vmem:[%s283 + $0x8] sm:$0xff]
        %v488 = vld [vmem:[%s283 + $0x10] sm:$0xff]
        %v489 = vld [vmem:[%s283 + $0x18] sm:$0xff]
        %v490 = vld [vmem:[%s283 + $0x20] sm:$0xff]
        %v491 = vld [vmem:[%s283 + $0x28] sm:$0xff]
        %v492 = vld [vmem:[%s283 + $0x30] sm:$0xff]
        %v493 = vld [vmem:[%s283 + $0x38] sm:$0xff]
        %494 = vset.pattern.permute.xlu0 3
        %495 = vperm.xlu0 %494, %v319
        %v496 = vpop.permute.xlu0 %495
        %498 = vset.pattern.permute.xlu0 3
        %499 = vperm.xlu0 %498, %v320
        %v500 = vpop.permute.xlu0 %499
        %502 = vset.pattern.permute.xlu0 3
        %503 = vperm.xlu0 %502, %v321
        %v504 = vpop.permute.xlu0 %503
        %506 = vset.pattern.permute.xlu0 3
        %507 = vperm.xlu0 %506, %v322
        %v508 = vpop.permute.xlu0 %507
        %v510 = vmul.f32 %v496, %v486
        %v511 = vmul.f32 %v496, %v487
        %v512 = vmul.f32 %v500, %v488
        %v513 = vmul.f32 %v500, %v489
        %v514 = vmul.f32 %v504, %v490
        %v515 = vmul.f32 %v504, %v491
        %v516 = vmul.f32 %v508, %v492
        %v517 = vmul.f32 %v508, %v493
        %518 = vset.pattern.permute.xlu0 4
        %519 = vperm.xlu0 %518, %v319
        %v520 = vpop.permute.xlu0 %519
        %522 = vset.pattern.permute.xlu0 4
        %523 = vperm.xlu0 %522, %v320
        %v524 = vpop.permute.xlu0 %523
        %526 = vset.pattern.permute.xlu0 4
        %527 = vperm.xlu0 %526, %v321
        %v528 = vpop.permute.xlu0 %527
        %530 = vset.pattern.permute.xlu0 4
        %531 = vperm.xlu0 %530, %v322
        %v532 = vpop.permute.xlu0 %531
        %v534 = vadd.f32 %v510, %v520
        %v535 = vadd.f32 %v511, %v520
        %v536 = vadd.f32 %v512, %v524
        %v537 = vadd.f32 %v513, %v524
        %v538 = vadd.f32 %v514, %v528
        %v539 = vadd.f32 %v515, %v528
        %v540 = vadd.f32 %v516, %v532
        %v541 = vadd.f32 %v517, %v532
        %v542 = vmax.f32 %v534, 0.0
        %v543 = vmax.f32 %v535, 0.0
        %v544 = vmax.f32 %v536, 0.0
        %v545 = vmax.f32 %v537, 0.0
        %v546 = vmax.f32 %v538, 0.0
        %v547 = vmax.f32 %v539, 0.0
        %v548 = vmax.f32 %v540, 0.0
        %v549 = vmax.f32 %v541, 0.0
        %v550 = vadd.f32 %v446, %v542
        %v551 = vadd.f32 %v475, %v543
        %v552 = vadd.f32 %v449, %v544
        %v553 = vadd.f32 %v478, %v545
        %v554 = vadd.f32 %v452, %v546
        %v555 = vadd.f32 %v481, %v547
        %v556 = vadd.f32 %v455, %v548
        %v557 = vadd.f32 %v484, %v549
        %558 = vst [vmem:[%s315] sm:$0xff] %v550
        %559 = vst [vmem:[%s315 + $0x8] sm:$0xff] %v551
        %560 = vst [vmem:[%s315 + $0x10] sm:$0xff] %v552
        %561 = vst [vmem:[%s315 + $0x18] sm:$0xff] %v553
        %562 = vst [vmem:[%s315 + $0x20] sm:$0xff] %v554
        %563 = vst [vmem:[%s315 + $0x28] sm:$0xff] %v555
        %564 = vst [vmem:[%s315 + $0x30] sm:$0xff] %v556
        %565 = vst [vmem:[%s315 + $0x38] sm:$0xff] %v557
        %s566 = sand.u32 %s135, 1
        %s567 = sand.u32 %s135, 1
        %s568 = smul.addr %s567, 64
        %s569 = scalar_lea.vmem [#allocation4], %s568
        // Predicated region
        $region98: #{resnet_block_forward.5} parent=88 // pred_check
          %p570 = pneg %p145
        $region99: #{resnet_block_forward.5} parent=88 // pred_check_branch
          %572 = sbr.rel (%p570) target = $region101
        $region100: #{resnet_block_forward.5} parent=88 // pred_region
          %s573 = smul.u32 2, %s20
          %s574 = smul.addr %s19, 24
          %s575 = sadd.s32 %s573, %s574
          %s576 = smul.addr %s575, 8
          %s577 = scalar_lea.vmem %s4, %s576
          // Predicated region
          $region102: #{resnet_block_forward.5} parent=100 // pred_check
            _
          $region103: #{resnet_block_forward.5} parent=100 // pred_check_branch
            %579 = sbr.rel (0) target = $region105
          $region104: #{resnet_block_forward.5} parent=100 // pred_region
            // Predicated region
            $region106: #{resnet_block_forward.5} parent=104 // pred_check
              _
            $region107: #{resnet_block_forward.5} parent=104 // pred_check_branch
              %581 = sbr.rel (0) target = $region109
            $region108: #{resnet_block_forward.5} parent=104 // pred_region
              loop: start=0, step=1, limit=1
              $region110: #{resnet_block_forward.5} parent=108 // loop_pre_header
                _
              $region111: #{resnet_block_forward.5} parent=108 // loop_header
                %s583 = sphi 0, %s587
                %p584 = scmp.ge.s32.totalorder %s583, 1
                %s588 = sphi %s569, %s569
                %s589 = sphi %s577, %s577
              $region112: #{resnet_block_forward.5} parent=108 // loop_header_branch
                %586 = sbr.rel (%p584) target = $region116
              $region113: #{resnet_block_forward.5} parent=108 // loop_body
                %v590 = vld [vmem:[%s588] sm:$0xff]
                %591 = vst [vmem:[%s589] sm:$0xff] %v590
                %v592 = vld [vmem:[%s588 + $0x8] sm:$0xff]
                %593 = vst [vmem:[%s589 + $0x8] sm:$0xff] %v592
                %v594 = vld [vmem:[%s588 + $0x10] sm:$0xff]
                %595 = vst [vmem:[%s589 + $0x30] sm:$0xff] %v594
                %v596 = vld [vmem:[%s588 + $0x18] sm:$0xff]
                %597 = vst [vmem:[%s589 + $0x38] sm:$0xff] %v596
                %v598 = vld [vmem:[%s588 + $0x20] sm:$0xff]
                %599 = vst [vmem:[%s589 + $0x60] sm:$0xff] %v598
                %v600 = vld [vmem:[%s588 + $0x28] sm:$0xff]
                %601 = vst [vmem:[%s589 + $0x68] sm:$0xff] %v600
                %v602 = vld [vmem:[%s588 + $0x30] sm:$0xff]
                %603 = vst [vmem:[%s589 + $0x90] sm:$0xff] %v602
                %v604 = vld [vmem:[%s588 + $0x38] sm:$0xff]
                %605 = vst [vmem:[%s589 + $0x98] sm:$0xff] %v604
              $region114: #{resnet_block_forward.5} parent=108 // loop_footer
                %s587 = sadd.s32 1, %s583
              $region115: #{resnet_block_forward.5} parent=108 // loop_footer_branch
                %582 = sbr.rel target = $region111
              $region116: #{resnet_block_forward.5} parent=108 // loop_exit
                _
            $region109: #{resnet_block_forward.5} parent=104 // pred_fallthru
              _
            // Predicated region
            $region117: #{resnet_block_forward.5} parent=104 // pred_check
              _
            $region118: #{resnet_block_forward.5} parent=104 // pred_check_branch
              %607 = sbr.rel target = $region120
            $region119: #{resnet_block_forward.5} parent=104 // pred_region
              _
            $region120: #{resnet_block_forward.5} parent=104 // pred_fallthru
              _
          $region105: #{resnet_block_forward.5} parent=100 // pred_fallthru
            _
          %608 = vnop
        $region101: #{resnet_block_forward.5} parent=88 // pred_fallthru
          _
      $region89: #{resnet_block_forward.5} parent=5 // pred_fallthru
        _
      %p609 = scmp.le.s32.totalorder 2, %s10
      // Predicated region
      $region121: #{resnet_block_forward.5} parent=5 // pred_check
        %p610 = pneg %p609
      $region122: #{resnet_block_forward.5} parent=5 // pred_check_branch
        %612 = sbr.rel (%p610) target = $region124
      $region123: #{resnet_block_forward.5} parent=5 // pred_region
        %s613 = ssub.s32 %s10, 2
        // Predicated region
        $region125: #{resnet_block_forward.5} parent=123 // pred_check
          %p614 = pneg %p151
        $region126: #{resnet_block_forward.5} parent=123 // pred_check_branch
          %616 = sbr.rel (%p614) target = $region128
        $region127: #{resnet_block_forward.5} parent=123 // pred_region
          %s617 = sand.u32 %s136, 1
          %s618 = sand.u32 %s136, 1
          %s619 = smul.addr %s618, 64
          %s620 = scalar_lea.vmem [#allocation4], %s619
        $region128: #{resnet_block_forward.5} parent=123 // pred_fallthru
          _
      $region124: #{resnet_block_forward.5} parent=5 // pred_fallthru
        _
    $region6: #{resnet_block_forward.5} parent=1 // loop_footer
      %s14 = sadd.s32 1, %s10
    $region7: #{resnet_block_forward.5} parent=1 // loop_footer_branch
      %9 = sbr.rel target = $region3
    $region8: #{resnet_block_forward.5} parent=1 // loop_exit
      _

</llo_original>
